<compile_context>
chip_gen: v7x
topology: tpu7x:2x2x1
jax: 0.10.0
libtpu: 0.0.40
codegen_flags: <defaults>
</compile_context>

<pallas_src>
import jax
import jax.numpy as jnp
from jax.experimental import pallas as pl
from jax.experimental.pallas import tpu as pltpu


def _round_up(x, m):
    return ((x + m - 1) // m) * m


def _pick_chunk(tb, max_chunk=512):
    """Largest multiple of 128 that divides tb and is <= max_chunk."""
    for c in range(max_chunk, 0, -128):
        if tb % c == 0:
            return c
    return tb


def _make_mlp2_kernel(n_layers, last_on_vpu, mxu_dtype, chunk, n_chunks,
                      fast_sigmoid, silu_dtype):
    """Kernel signature: (x_ref, w0, b0, w1, b1, ..., o_ref)."""

    def silu(z_f32):
        # z_f32 is always f32 (bias add in f32). exp + reciprocal go to the EUP
        # (approx reciprocal avoids the VALU Newton refinement); the multiply and
        # the value handed to the next layer are in silu_dtype (bf16 on v6e/v7x).
        if fast_sigmoid:
            sig = pl.reciprocal(1.0 + jnp.exp(-z_f32), approx=True)
        else:
            sig = jax.nn.sigmoid(z_f32)
        return z_f32.astype(silu_dtype) * sig.astype(silu_dtype)

    def kernel(x_ref, *refs):
        o_ref = refs[-1]
        wb = refs[:-1]
        # Tiny weights/biases: load once per grid step, reuse across sub-chunks.
        ws = [wb[2 * l][...] for l in range(n_layers)]
        bs = [wb[2 * l + 1][...] for l in range(n_layers)]       # (out, 1) f32

        # Static sub-chunking of the lane (batch) axis: keeps activations in vregs
        # while the grid step (and its HBM DMA) stays large.
        for c in range(n_chunks):
            lo, hi = c * chunk, (c + 1) * chunk
            x = x_ref[lo:hi, :].astype(mxu_dtype)                 # (chunk, in)
            # Layer 0: contract the feature dim of BOTH operands (W0 @ x^T) so the
            # batch lands on the lane axis without an explicit transpose.
            h = jax.lax.dot_general(
                ws[0], x, (((1,), (1,)), ((), ())),
                preferred_element_type=jnp.float32)               # (h0, chunk) f32
            h = silu(h + bs[0])

            for l in range(1, n_layers):
                if l == n_layers - 1 and last_on_vpu:
                    # (K, 1) weight: lane-broadcast multiply + cross-sublane sum.
                    z = jnp.sum(h.astype(jnp.float32) * ws[l], axis=0,
                                keepdims=True)                    # (1, chunk)
                else:
                    z = jnp.dot(ws[l], h.astype(mxu_dtype),
                                preferred_element_type=jnp.float32)  # (hl, chunk)
                h = silu(z + bs[l])                               # SiLU after every layer

            o_ref[:, lo:hi] = h.astype(o_ref.dtype)

    return kernel


def mlp2_forward(x, params, *, block_batch=2048, mxu_dtype=jnp.bfloat16,
                 silu_dtype=jnp.float32, fast_sigmoid=True, x_stream_dtype=None):
    """Fused MLP2 forward.

    x:      (..., in_channels) float array.
    params: list of (W, b); W: (out, in) PyTorch orientation, b: (out,).
    Returns (..., hidden_channels[-1]) float32.
    """
    lead = x.shape[:-1]
    in_dim = x.shape[-1]
    stream_dtype = jnp.float32 if x_stream_dtype is None else x_stream_dtype
    x2 = jnp.asarray(x, stream_dtype).reshape(-1, in_dim)
    batch = x2.shape[0]

    n_layers = len(params)
    out_dim = int(params[-1][0].shape[0])
    last_on_vpu = out_dim == 1            # tiny last layer -> VPU/XLU, skip the MXU

    # Lane-dense batch tile (multiple of 128). No host-side padding: the last grid
    # step handles the ragged tile via Pallas OOB masking (safe, see header note).
    tb = _round_up(max(1, min(block_batch, batch)), 128)
    # Keep >= 2 grid steps when there is enough work so the "parallel" batch axis can
    # shard across both TensorCores on v7x (harmless no-op on single-core v5e/v6e).
    if batch > 128 and pl.cdiv(batch, tb) < 2:
        tb = _round_up(pl.cdiv(batch, 2), 128)
    grid = (pl.cdiv(batch, tb),)
    chunk = _pick_chunk(tb)
    n_chunks = tb // chunk
    # NOTE: VMEM is not a constraint at these sizes on any generation (incl. v7x's
    # 64 MiB): a (tb, in_dim) tile is <=256 KiB double-buffered; weights are a few KiB.

    operands = [x2]
    in_specs = [pl.BlockSpec((tb, in_dim), lambda i: (i, 0))]
    for l, (w, b) in enumerate(params):
        if l == n_layers - 1 and last_on_vpu:
            w_op = jnp.asarray(w, jnp.float32).T           # (K, 1) for the VPU path
        else:
            w_op = jnp.asarray(w, mxu_dtype)               # (out, in)
        b_op = jnp.asarray(b, jnp.float32).reshape(-1, 1)  # (out, 1)
        operands += [w_op, b_op]
        in_specs += [pl.BlockSpec(w_op.shape, lambda i: (0, 0)),
                     pl.BlockSpec(b_op.shape, lambda i: (0, 0))]

    flops = 2 * batch * sum(int(w.shape[0]) * int(w.shape[1]) for w, _ in params)
    transcendentals = batch * sum(int(w.shape[0]) for w, _ in params)  # 1 exp/unit
    bytes_accessed = (int(x2.size) * x2.dtype.itemsize + batch * out_dim * 4
                      + sum(int(o.size) * o.dtype.itemsize for o in operands[1:]))

    out_t = pl.pallas_call(
        _make_mlp2_kernel(n_layers, last_on_vpu, mxu_dtype, chunk, n_chunks,
                          fast_sigmoid, silu_dtype),
        out_shape=jax.ShapeDtypeStruct((out_dim, batch), jnp.float32),
        grid=grid,
        in_specs=in_specs,
        out_specs=pl.BlockSpec((out_dim, tb), lambda i: (0, i)),
        compiler_params=pltpu.CompilerParams(
            dimension_semantics=("parallel",)),
        cost_estimate=pl.CostEstimate(flops=flops,
                                      transcendentals=transcendentals,
                                      bytes_accessed=bytes_accessed),
    )(*operands)

    # (out_dim, batch) -> (batch, out_dim): tiny layout plumbing on the host.
    return out_t.T.reshape(*lead, out_dim)


def init_mlp2_params(key, in_channels, hidden_channels, scale=1.25):
    """Demo parameters with PyTorch nn.Linear layouts: W (out, in), b (out,)."""
    dims = [in_channels] + list(hidden_channels)
    params = []
    for i in range(len(dims) - 1):
        key, kw, kb = jax.random.split(key, 3)
        w = (scale / jnp.sqrt(jnp.float32(dims[i]))) * jax.random.normal(
            kw, (dims[i + 1], dims[i]), dtype=jnp.float32)
        b = 0.1 * jax.random.normal(kb, (dims[i + 1],), dtype=jnp.float32)
        params.append((w, b))
    return params


def mlp2_reference(x, params):
    """Plain-JAX reference (f32, highest matmul precision)."""
    lead = x.shape[:-1]
    h = jnp.asarray(x, jnp.float32).reshape(-1, x.shape[-1])
    for w, b in params:
        h = jnp.dot(h, jnp.asarray(w, jnp.float32).T,
                    precision=jax.lax.Precision.HIGHEST) + b[None, :]
        h = h * jax.nn.sigmoid(h)
    return h.reshape(*lead, int(params[-1][0].shape[0]))


if __name__ == "__main__":
    # Config consistent with MLP2's constructor:
    #   MLP2(in_channels=32, hidden_channels=[64, 32, 8, 1])
    in_channels = 32
    hidden_channels = [64, 32, 8, 1]
    batch = 2000      # NOT a tile multiple: exercises the ragged (masked) last tile,
                      # a 2-step "parallel" grid, and 2 in-kernel lane sub-chunks.

    key = jax.random.PRNGKey(0)
    key, kx = jax.random.split(key)
    x = jax.random.normal(kx, (batch, in_channels), dtype=jnp.float32)
    params = init_mlp2_params(key, in_channels, hidden_channels)

    ref = mlp2_reference(x, params)
    ref_scale = float(jnp.max(jnp.abs(ref)))

    def check(out, tol):
        assert out.shape == (batch, hidden_channels[-1]), out.shape
        err = float(jnp.max(jnp.abs(out - ref)))
        assert err <= tol * max(ref_scale, 1.0), (err, ref_scale)

    # 1) Default fast path: bf16 MXU operands, f32 SiLU, approx-reciprocal sigmoid.
    out_a = jax.block_until_ready(mlp2_forward(x, params))
    check(out_a, tol=5e-2)

    # 2) v6e/v7x-leaning path: bf16 input streaming + bf16 SiLU multiplies.
    out_b = jax.block_until_ready(
        mlp2_forward(x, params, x_stream_dtype=jnp.bfloat16,
                     silu_dtype=jnp.bfloat16))
    check(out_b, tol=7e-2)

    # 3) f32 MXU operands, exact sigmoid (tolerance still covers MXU f32-emulation
    #    differences across TPU generations).
    out_c = jax.block_until_ready(
        mlp2_forward(x, params, mxu_dtype=jnp.float32, fast_sigmoid=False))
    check(out_c, tol=5e-2)

    print("KERNEL_OK")
</pallas_src>

<mosaic_0001>
module attributes {stable_mosaic.version = 11 : i64} {
  func.func @kernel(%arg0: i32, %arg1: memref<1024x32xf32, #tpu.memory_space<vmem>>, %arg2: memref<64x32xbf16, #tpu.memory_space<vmem>>, %arg3: memref<64x1xf32, #tpu.memory_space<vmem>>, %arg4: memref<32x64xbf16, #tpu.memory_space<vmem>>, %arg5: memref<32x1xf32, #tpu.memory_space<vmem>>, %arg6: memref<8x32xbf16, #tpu.memory_space<vmem>>, %arg7: memref<8x1xf32, #tpu.memory_space<vmem>>, %arg8: memref<8x1xf32, #tpu.memory_space<vmem>>, %arg9: memref<1x1xf32, #tpu.memory_space<vmem>>, %arg10: memref<1x1024xf32, #tpu.memory_space<vmem>>) attributes {dimension_semantics = [#tpu.dimension_semantics<parallel>], iteration_bounds = array<i64: 2>, scalar_prefetch = 0 : i64, scratch_operands = 0 : i64, tpu.core_type = #tpu.core_type<tc>, window_params = [{transform_indices = @transform_0, window_bounds = array<i64: 1024, 32>}, {pipeline_mode = #tpu.pipeline_mode<synchronous>, transform_indices = @transform_1, window_bounds = array<i64: 64, 32>}, {pipeline_mode = #tpu.pipeline_mode<synchronous>, transform_indices = @transform_2, window_bounds = array<i64: 64, 1>}, {pipeline_mode = #tpu.pipeline_mode<synchronous>, transform_indices = @transform_3, window_bounds = array<i64: 32, 64>}, {pipeline_mode = #tpu.pipeline_mode<synchronous>, transform_indices = @transform_4, window_bounds = array<i64: 32, 1>}, {pipeline_mode = #tpu.pipeline_mode<synchronous>, transform_indices = @transform_5, window_bounds = array<i64: 8, 32>}, {pipeline_mode = #tpu.pipeline_mode<synchronous>, transform_indices = @transform_6, window_bounds = array<i64: 8, 1>}, {pipeline_mode = #tpu.pipeline_mode<synchronous>, transform_indices = @transform_7, window_bounds = array<i64: 8, 1>}, {pipeline_mode = #tpu.pipeline_mode<synchronous>, transform_indices = @transform_8, window_bounds = array<i64: 1, 1>}, {transform_indices = @transform_9, window_bounds = array<i64: 1, 1024>}]} {
    %c0 = arith.constant 0 : index
    %c0_0 = arith.constant 0 : index
    %0 = vector.load %arg2[%c0, %c0_0] : memref<64x32xbf16, #tpu.memory_space<vmem>>, vector<64x32xbf16>
    %c0_1 = arith.constant 0 : index
    %c0_2 = arith.constant 0 : index
    %1 = vector.load %arg4[%c0_1, %c0_2] : memref<32x64xbf16, #tpu.memory_space<vmem>>, vector<32x64xbf16>
    %c0_3 = arith.constant 0 : index
    %c0_4 = arith.constant 0 : index
    %2 = vector.load %arg6[%c0_3, %c0_4] : memref<8x32xbf16, #tpu.memory_space<vmem>>, vector<8x32xbf16>
    %c0_5 = arith.constant 0 : index
    %c0_6 = arith.constant 0 : index
    %3 = vector.load %arg8[%c0_5, %c0_6] : memref<8x1xf32, #tpu.memory_space<vmem>>, vector<8x1xf32>
    %c0_7 = arith.constant 0 : index
    %c0_8 = arith.constant 0 : index
    %4 = vector.load %arg3[%c0_7, %c0_8] : memref<64x1xf32, #tpu.memory_space<vmem>>, vector<64x1xf32>
    %c0_9 = arith.constant 0 : index
    %c0_10 = arith.constant 0 : index
    %5 = vector.load %arg5[%c0_9, %c0_10] : memref<32x1xf32, #tpu.memory_space<vmem>>, vector<32x1xf32>
    %c0_11 = arith.constant 0 : index
    %c0_12 = arith.constant 0 : index
    %6 = vector.load %arg7[%c0_11, %c0_12] : memref<8x1xf32, #tpu.memory_space<vmem>>, vector<8x1xf32>
    %c0_13 = arith.constant 0 : index
    %c0_14 = arith.constant 0 : index
    %7 = vector.load %arg9[%c0_13, %c0_14] : memref<1x1xf32, #tpu.memory_space<vmem>>, vector<1x1xf32>
    %c0_15 = arith.constant 0 : index
    %c0_16 = arith.constant 0 : index
    %8 = vector.load %arg1[%c0_15, %c0_16] : memref<1024x32xf32, #tpu.memory_space<vmem>>, vector<512x32xf32>
    %9 = arith.truncf %8 : vector<512x32xf32> to vector<512x32xbf16>
    %cst = arith.constant dense<0.000000e+00> : vector<64x512xf32>
    %10 = tpu.matmul %0, %9, %cst {dimension_numbers = #tpu.dot_dimension_numbers<[1], [1], [0], [0], [0, 0, 1, 0], [], []>} : vector<64x32xbf16>, vector<512x32xbf16>, vector<64x512xf32> -> vector<64x512xf32>
    %11 = vector.broadcast %4 : vector<64x1xf32> to vector<64x512xf32>
    %12 = arith.addf %10, %11 : vector<64x512xf32>
    %cst_17 = arith.constant 0.000000e+00 : f32
    %13 = vector.broadcast %cst_17 : f32 to vector<64x512xf32>
    %14 = arith.subf %13, %12 : vector<64x512xf32>
    %15 = math.exp %14 : vector<64x512xf32>
    %cst_18 = arith.constant 1.000000e+00 : f32
    %16 = vector.broadcast %cst_18 : f32 to vector<64x512xf32>
    %17 = arith.addf %16, %15 : vector<64x512xf32>
    %18 = tpu.reciprocal %17 {approx = true} : vector<64x512xf32> -> vector<64x512xf32>
    %19 = arith.mulf %12, %18 : vector<64x512xf32>
    %20 = arith.truncf %19 : vector<64x512xf32> to vector<64x512xbf16>
    %cst_19 = arith.constant dense<0.000000e+00> : vector<32x512xf32>
    %21 = tpu.matmul %1, %20, %cst_19 {dimension_numbers = #tpu.dot_dimension_numbers<[1], [0], [0], [1], [0, 0, 1, 1], [], []>} : vector<32x64xbf16>, vector<64x512xbf16>, vector<32x512xf32> -> vector<32x512xf32>
    %22 = vector.broadcast %5 : vector<32x1xf32> to vector<32x512xf32>
    %23 = arith.addf %21, %22 : vector<32x512xf32>
    %cst_20 = arith.constant 0.000000e+00 : f32
    %24 = vector.broadcast %cst_20 : f32 to vector<32x512xf32>
    %25 = arith.subf %24, %23 : vector<32x512xf32>
    %26 = math.exp %25 : vector<32x512xf32>
    %cst_21 = arith.constant 1.000000e+00 : f32
    %27 = vector.broadcast %cst_21 : f32 to vector<32x512xf32>
    %28 = arith.addf %27, %26 : vector<32x512xf32>
    %29 = tpu.reciprocal %28 {approx = true} : vector<32x512xf32> -> vector<32x512xf32>
    %30 = arith.mulf %23, %29 : vector<32x512xf32>
    %31 = arith.truncf %30 : vector<32x512xf32> to vector<32x512xbf16>
    %cst_22 = arith.constant dense<0.000000e+00> : vector<8x512xf32>
    %32 = tpu.matmul %2, %31, %cst_22 {dimension_numbers = #tpu.dot_dimension_numbers<[1], [0], [0], [1], [0, 0, 1, 1], [], []>} : vector<8x32xbf16>, vector<32x512xbf16>, vector<8x512xf32> -> vector<8x512xf32>
    %33 = vector.broadcast %6 : vector<8x1xf32> to vector<8x512xf32>
    %34 = arith.addf %32, %33 : vector<8x512xf32>
    %cst_23 = arith.constant 0.000000e+00 : f32
    %35 = vector.broadcast %cst_23 : f32 to vector<8x512xf32>
    %36 = arith.subf %35, %34 : vector<8x512xf32>
    %37 = math.exp %36 : vector<8x512xf32>
    %cst_24 = arith.constant 1.000000e+00 : f32
    %38 = vector.broadcast %cst_24 : f32 to vector<8x512xf32>
    %39 = arith.addf %38, %37 : vector<8x512xf32>
    %40 = tpu.reciprocal %39 {approx = true} : vector<8x512xf32> -> vector<8x512xf32>
    %41 = arith.mulf %34, %40 : vector<8x512xf32>
    %42 = vector.broadcast %3 : vector<8x1xf32> to vector<8x512xf32>
    %43 = arith.mulf %41, %42 : vector<8x512xf32>
    %cst_25 = arith.constant dense<0.000000e+00> : vector<512xf32>
    %44 = vector.multi_reduction <add>, %43, %cst_25 [0] : vector<8x512xf32> to vector<512xf32>
    %45 = vector.shape_cast %44 : vector<512xf32> to vector<1x512xf32>
    %46 = vector.broadcast %7 : vector<1x1xf32> to vector<1x512xf32>
    %47 = arith.addf %45, %46 : vector<1x512xf32>
    %cst_26 = arith.constant 0.000000e+00 : f32
    %48 = vector.broadcast %cst_26 : f32 to vector<1x512xf32>
    %49 = arith.subf %48, %47 : vector<1x512xf32>
    %50 = math.exp %49 : vector<1x512xf32>
    %cst_27 = arith.constant 1.000000e+00 : f32
    %51 = vector.broadcast %cst_27 : f32 to vector<1x512xf32>
    %52 = arith.addf %51, %50 : vector<1x512xf32>
    %53 = tpu.reciprocal %52 {approx = true} : vector<1x512xf32> -> vector<1x512xf32>
    %54 = arith.mulf %47, %53 : vector<1x512xf32>
    %c0_28 = arith.constant 0 : index
    %c0_29 = arith.constant 0 : index
    %55 = vector.load %arg10[%c0_28, %c0_29] : memref<1x1024xf32, #tpu.memory_space<vmem>>, vector<1x512xf32>
    tpu.vector_store %arg10[%c0_28, %c0_29], %54 {strides = array<i32>} : memref<1x1024xf32, #tpu.memory_space<vmem>>, vector<1x512xf32>,
    %c512 = arith.constant 512 : index
    %c0_30 = arith.constant 0 : index
    %56 = vector.load %arg1[%c512, %c0_30] : memref<1024x32xf32, #tpu.memory_space<vmem>>, vector<512x32xf32>
    %57 = arith.truncf %56 : vector<512x32xf32> to vector<512x32xbf16>
    %cst_31 = arith.constant dense<0.000000e+00> : vector<64x512xf32>
    %58 = tpu.matmul %0, %57, %cst_31 {dimension_numbers = #tpu.dot_dimension_numbers<[1], [1], [0], [0], [0, 0, 1, 0], [], []>} : vector<64x32xbf16>, vector<512x32xbf16>, vector<64x512xf32> -> vector<64x512xf32>
    %59 = vector.broadcast %4 : vector<64x1xf32> to vector<64x512xf32>
    %60 = arith.addf %58, %59 : vector<64x512xf32>
    %cst_32 = arith.constant 0.000000e+00 : f32
    %61 = vector.broadcast %cst_32 : f32 to vector<64x512xf32>
    %62 = arith.subf %61, %60 : vector<64x512xf32>
    %63 = math.exp %62 : vector<64x512xf32>
    %cst_33 = arith.constant 1.000000e+00 : f32
    %64 = vector.broadcast %cst_33 : f32 to vector<64x512xf32>
    %65 = arith.addf %64, %63 : vector<64x512xf32>
    %66 = tpu.reciprocal %65 {approx = true} : vector<64x512xf32> -> vector<64x512xf32>
    %67 = arith.mulf %60, %66 : vector<64x512xf32>
    %68 = arith.truncf %67 : vector<64x512xf32> to vector<64x512xbf16>
    %cst_34 = arith.constant dense<0.000000e+00> : vector<32x512xf32>
    %69 = tpu.matmul %1, %68, %cst_34 {dimension_numbers = #tpu.dot_dimension_numbers<[1], [0], [0], [1], [0, 0, 1, 1], [], []>} : vector<32x64xbf16>, vector<64x512xbf16>, vector<32x512xf32> -> vector<32x512xf32>
    %70 = vector.broadcast %5 : vector<32x1xf32> to vector<32x512xf32>
    %71 = arith.addf %69, %70 : vector<32x512xf32>
    %cst_35 = arith.constant 0.000000e+00 : f32
    %72 = vector.broadcast %cst_35 : f32 to vector<32x512xf32>
    %73 = arith.subf %72, %71 : vector<32x512xf32>
    %74 = math.exp %73 : vector<32x512xf32>
    %cst_36 = arith.constant 1.000000e+00 : f32
    %75 = vector.broadcast %cst_36 : f32 to vector<32x512xf32>
    %76 = arith.addf %75, %74 : vector<32x512xf32>
    %77 = tpu.reciprocal %76 {approx = true} : vector<32x512xf32> -> vector<32x512xf32>
    %78 = arith.mulf %71, %77 : vector<32x512xf32>
    %79 = arith.truncf %78 : vector<32x512xf32> to vector<32x512xbf16>
    %cst_37 = arith.constant dense<0.000000e+00> : vector<8x512xf32>
    %80 = tpu.matmul %2, %79, %cst_37 {dimension_numbers = #tpu.dot_dimension_numbers<[1], [0], [0], [1], [0, 0, 1, 1], [], []>} : vector<8x32xbf16>, vector<32x512xbf16>, vector<8x512xf32> -> vector<8x512xf32>
    %81 = vector.broadcast %6 : vector<8x1xf32> to vector<8x512xf32>
    %82 = arith.addf %80, %81 : vector<8x512xf32>
    %cst_38 = arith.constant 0.000000e+00 : f32
    %83 = vector.broadcast %cst_38 : f32 to vector<8x512xf32>
    %84 = arith.subf %83, %82 : vector<8x512xf32>
    %85 = math.exp %84 : vector<8x512xf32>
    %cst_39 = arith.constant 1.000000e+00 : f32
    %86 = vector.broadcast %cst_39 : f32 to vector<8x512xf32>
    %87 = arith.addf %86, %85 : vector<8x512xf32>
    %88 = tpu.reciprocal %87 {approx = true} : vector<8x512xf32> -> vector<8x512xf32>
    %89 = arith.mulf %82, %88 : vector<8x512xf32>
    %90 = vector.broadcast %3 : vector<8x1xf32> to vector<8x512xf32>
    %91 = arith.mulf %89, %90 : vector<8x512xf32>
    %cst_40 = arith.constant dense<0.000000e+00> : vector<512xf32>
    %92 = vector.multi_reduction <add>, %91, %cst_40 [0] : vector<8x512xf32> to vector<512xf32>
    %93 = vector.shape_cast %92 : vector<512xf32> to vector<1x512xf32>
    %94 = vector.broadcast %7 : vector<1x1xf32> to vector<1x512xf32>
    %95 = arith.addf %93, %94 : vector<1x512xf32>
    %cst_41 = arith.constant 0.000000e+00 : f32
    %96 = vector.broadcast %cst_41 : f32 to vector<1x512xf32>
    %97 = arith.subf %96, %95 : vector<1x512xf32>
    %98 = math.exp %97 : vector<1x512xf32>
    %cst_42 = arith.constant 1.000000e+00 : f32
    %99 = vector.broadcast %cst_42 : f32 to vector<1x512xf32>
    %100 = arith.addf %99, %98 : vector<1x512xf32>
    %101 = tpu.reciprocal %100 {approx = true} : vector<1x512xf32> -> vector<1x512xf32>
    %102 = arith.mulf %95, %101 : vector<1x512xf32>
    %c0_43 = arith.constant 0 : index
    %c512_44 = arith.constant 512 : index
    %103 = vector.load %arg10[%c0_43, %c512_44] : memref<1x1024xf32, #tpu.memory_space<vmem>>, vector<1x512xf32>
    tpu.vector_store %arg10[%c0_43, %c512_44], %102 {strides = array<i32>} : memref<1x1024xf32, #tpu.memory_space<vmem>>, vector<1x512xf32>,
    return
  }
  func.func @transform_0(%arg0: i32) -> (i32, i32) {
    %c0_i32 = arith.constant 0 : i32
    %c0_i32_0 = arith.constant 0 : i32
    return %arg0, %c0_i32 : i32, i32
  }
  func.func @transform_1(%arg0: i32) -> (i32, i32) {
    %c0_i32 = arith.constant 0 : i32
    %c0_i32_0 = arith.constant 0 : i32
    %c0_i32_1 = arith.constant 0 : i32
    return %c0_i32, %c0_i32_0 : i32, i32
  }
  func.func @transform_2(%arg0: i32) -> (i32, i32) {
    %c0_i32 = arith.constant 0 : i32
    %c0_i32_0 = arith.constant 0 : i32
    %c0_i32_1 = arith.constant 0 : i32
    return %c0_i32, %c0_i32_0 : i32, i32
  }
  func.func @transform_3(%arg0: i32) -> (i32, i32) {
    %c0_i32 = arith.constant 0 : i32
    %c0_i32_0 = arith.constant 0 : i32
    %c0_i32_1 = arith.constant 0 : i32
    return %c0_i32, %c0_i32_0 : i32, i32
  }
  func.func @transform_4(%arg0: i32) -> (i32, i32) {
    %c0_i32 = arith.constant 0 : i32
    %c0_i32_0 = arith.constant 0 : i32
    %c0_i32_1 = arith.constant 0 : i32
    return %c0_i32, %c0_i32_0 : i32, i32
  }
  func.func @transform_5(%arg0: i32) -> (i32, i32) {
    %c0_i32 = arith.constant 0 : i32
    %c0_i32_0 = arith.constant 0 : i32
    %c0_i32_1 = arith.constant 0 : i32
    return %c0_i32, %c0_i32_0 : i32, i32
  }
  func.func @transform_6(%arg0: i32) -> (i32, i32) {
    %c0_i32 = arith.constant 0 : i32
    %c0_i32_0 = arith.constant 0 : i32
    %c0_i32_1 = arith.constant 0 : i32
    return %c0_i32, %c0_i32_0 : i32, i32
  }
  func.func @transform_7(%arg0: i32) -> (i32, i32) {
    %c0_i32 = arith.constant 0 : i32
    %c0_i32_0 = arith.constant 0 : i32
    %c0_i32_1 = arith.constant 0 : i32
    return %c0_i32, %c0_i32_0 : i32, i32
  }
  func.func @transform_8(%arg0: i32) -> (i32, i32) {
    %c0_i32 = arith.constant 0 : i32
    %c0_i32_0 = arith.constant 0 : i32
    %c0_i32_1 = arith.constant 0 : i32
    return %c0_i32, %c0_i32_0 : i32, i32
  }
  func.func @transform_9(%arg0: i32) -> (i32, i32) {
    %c0_i32 = arith.constant 0 : i32
    %c0_i32_0 = arith.constant 0 : i32
    return %c0_i32, %arg0 : i32, i32
  }
}

</mosaic_0001>

<llo_original>
// kernel: tpu_custom_call.1
$region0: #{tpu_custom_call.1}
  #allocation0 [shape = 'u32[]', space=smem, size = 0x4, offset = 0x4, fixed_abs, tag = 'smem constant byte address 0x4 - core index']
  #allocation1 [shape = 'u32[144,128]{1,0:T(1,128)}', space=vmem, size = 0x12000, scoped, tag = 'internal scratch']
  #allocation2 [shape = 'f32[1,1]{1,0:T(1,128)S(1)}', space=vmem, size = 0x200, scoped, tag = 'scoped memory for tpu_custom_call.1']
  %s0 = inlined_call_operand.vmem [shape: f32[2000,32], index: 0, kind: input, shape index: {}]
  %s1 = inlined_call_operand.vmem [shape: bf16[64,32], index: 1, kind: input, shape index: {}]
  %s2 = inlined_call_operand.vmem [shape: f32[64,1], index: 2, kind: input, shape index: {}]
  %s3 = inlined_call_operand.vmem [shape: bf16[32,64], index: 3, kind: input, shape index: {}]
  %s4 = inlined_call_operand.vmem [shape: f32[32,1], index: 4, kind: input, shape index: {}]
  %s5 = inlined_call_operand.vmem [shape: bf16[8,32], index: 5, kind: input, shape index: {}]
  %s6 = inlined_call_operand.vmem [shape: f32[8,1], index: 6, kind: input, shape index: {}]
  %s7 = inlined_call_operand.vmem [shape: f32[8,1], index: 7, kind: input, shape index: {}]
  %s8 = inlined_call_operand.<no memory space> [shape: f32[1,1], index: 8, kind: input, shape index: {}]
  %s9 = inlined_call_operand.hbm [shape: f32[1,2000], index: 9, kind: output, shape index: {}]
  %s10 = sld [smem:[#allocation0]]
  $region69: #{tpu_custom_call.1} parent=0
    _
  %s12 = ssub.s32 1, %s10
  %s13 = scalar_select 0, %s12, %s10
  %v14 = vstv %s8
  %15 = vst [vmem:[#allocation2] sm:$0x1] %v14
  $region1: #{tpu_custom_call.1} parent=0
    #allocation3 [shape = 'u8[8192]{0}', space=vmem, size = 0x2000, scoped, tag = 'output window, operand 0']
    #allocation4 [shape = 's32[2]{0}', space=sflag, size = 0x8, scoped, tag = 'scoped memory for tpu_custom_call.1']
    %16 = vsyncpa [#allocation4], 0
    %s17 = scalar_lea.sflag [#allocation4], 1
    %18 = vsyncpa %s17, 0
    loop: start=0, step=1, limit=4
    $region2: #{tpu_custom_call.1} parent=1 // loop_pre_header
      _
    $region3: #{tpu_custom_call.1} parent=1 // loop_header
      %s20 = sphi 0, %s24
      %p21 = scmp.ge.s32.totalorder %s20, 4
      %s30 = sphi 0, %s32
      %s33 = sphi 0, %s30
      %s34 = sphi 0, %s33
      %s50 = sphi 0, %s34
      %s54 = sphi 0, %s54
      %s56 = sphi 0, %s54
      %s57 = sphi 0, %s56
      %s71 = sphi 0, %s57
      %s75 = sphi 0, %s75
      %s77 = sphi 0, %s75
      %s78 = sphi 0, %s77
      %s92 = sphi 0, %s78
      %s96 = sphi 0, %s96
      %s98 = sphi 0, %s96
      %s99 = sphi 0, %s98
      %s113 = sphi 0, %s99
      %s117 = sphi 0, %s117
      %s119 = sphi 0, %s117
      %s120 = sphi 0, %s119
      %s134 = sphi 0, %s120
      %s138 = sphi 0, %s138
      %s140 = sphi 0, %s138
      %s141 = sphi 0, %s140
      %s155 = sphi 0, %s141
      %s159 = sphi 0, %s159
      %s161 = sphi 0, %s159
      %s162 = sphi 0, %s161
      %s176 = sphi 0, %s162
      %s180 = sphi 0, %s180
      %s182 = sphi 0, %s180
      %s183 = sphi 0, %s182
      %s197 = sphi 0, %s183
      %s201 = sphi 0, %s201
      %s203 = sphi 0, %s201
      %s204 = sphi 0, %s203
      %s218 = sphi 0, %s204
      %s224 = sphi 0, %s226
      %s227 = sphi 0, %s224
      %s228 = sphi 0, %s227
      %s244 = sphi 0, %s228
    $region4: #{tpu_custom_call.1} parent=1 // loop_header_branch
      %23 = sbr.rel (%p21) target = $region8
    $region5: #{tpu_custom_call.1} parent=1 // loop_body
      %s25 = ssub.s32 %s20, 1
      %s26 = ssub.s32 %s20, 2
      %s27 = sadd.s32 %s20, 1
      %s28 = ssub.s32 %s20, %s27
      %p29 = scmp.eq.s32.totalorder %s28, 0
      %s31 = sadd.s32 %s30, 1
      %s32 = scalar_select %p29, %s30, %s31
      %p35 = pneg %p29
      %p36 = scmp.eq.s32.totalorder %s20, 1
      %p37 = por %p35, %p36
      %p38 = scmp.ne.s32.totalorder %s30, %s33
      %p39 = scmp.eq.s32.totalorder %s20, 0
      %p40 = por %p38, %p39
      %p41 = scmp.ne.s32.totalorder %s30, %s33
      %p42 = scmp.eq.s32.totalorder %s25, 1
      %p43 = por %p41, %p42
      %p44 = scmp.ne.s32.totalorder %s33, %s34
      %p45 = scmp.eq.s32.totalorder %s25, 0
      %p46 = por %p44, %p45
      %p47 = scmp.ne.s32.totalorder %s33, %s34
      %p48 = scmp.eq.s32.totalorder %s26, 1
      %p49 = por %p47, %p48
      %p51 = scmp.ne.s32.totalorder %s34, %s50
      %p52 = scmp.eq.s32.totalorder %s26, 0
      %p53 = por %p51, %p52
      %s55 = sadd.s32 %s54, 1
      %p58 = scmp.eq.s32.totalorder %s20, 1
      %p59 = scmp.ne.s32.totalorder %s54, %s56
      %p60 = scmp.eq.s32.totalorder %s20, 0
      %p61 = por %p59, %p60
      %p62 = scmp.ne.s32.totalorder %s54, %s56
      %p63 = scmp.eq.s32.totalorder %s25, 1
      %p64 = por %p62, %p63
      %p65 = scmp.ne.s32.totalorder %s56, %s57
      %p66 = scmp.eq.s32.totalorder %s25, 0
      %p67 = por %p65, %p66
      %p68 = scmp.ne.s32.totalorder %s56, %s57
      %p69 = scmp.eq.s32.totalorder %s26, 1
      %p70 = por %p68, %p69
      %p72 = scmp.ne.s32.totalorder %s57, %s71
      %p73 = scmp.eq.s32.totalorder %s26, 0
      %p74 = por %p72, %p73
      %s76 = sadd.s32 %s75, 1
      %p79 = scmp.eq.s32.totalorder %s20, 1
      %p80 = scmp.ne.s32.totalorder %s75, %s77
      %p81 = scmp.eq.s32.totalorder %s20, 0
      %p82 = por %p80, %p81
      %p83 = scmp.ne.s32.totalorder %s75, %s77
      %p84 = scmp.eq.s32.totalorder %s25, 1
      %p85 = por %p83, %p84
      %p86 = scmp.ne.s32.totalorder %s77, %s78
      %p87 = scmp.eq.s32.totalorder %s25, 0
      %p88 = por %p86, %p87
      %p89 = scmp.ne.s32.totalorder %s77, %s78
      %p90 = scmp.eq.s32.totalorder %s26, 1
      %p91 = por %p89, %p90
      %p93 = scmp.ne.s32.totalorder %s78, %s92
      %p94 = scmp.eq.s32.totalorder %s26, 0
      %p95 = por %p93, %p94
      %s97 = sadd.s32 %s96, 1
      %p100 = scmp.eq.s32.totalorder %s20, 1
      %p101 = scmp.ne.s32.totalorder %s96, %s98
      %p102 = scmp.eq.s32.totalorder %s20, 0
      %p103 = por %p101, %p102
      %p104 = scmp.ne.s32.totalorder %s96, %s98
      %p105 = scmp.eq.s32.totalorder %s25, 1
      %p106 = por %p104, %p105
      %p107 = scmp.ne.s32.totalorder %s98, %s99
      %p108 = scmp.eq.s32.totalorder %s25, 0
      %p109 = por %p107, %p108
      %p110 = scmp.ne.s32.totalorder %s98, %s99
      %p111 = scmp.eq.s32.totalorder %s26, 1
      %p112 = por %p110, %p111
      %p114 = scmp.ne.s32.totalorder %s99, %s113
      %p115 = scmp.eq.s32.totalorder %s26, 0
      %p116 = por %p114, %p115
      %s118 = sadd.s32 %s117, 1
      %p121 = scmp.eq.s32.totalorder %s20, 1
      %p122 = scmp.ne.s32.totalorder %s117, %s119
      %p123 = scmp.eq.s32.totalorder %s20, 0
      %p124 = por %p122, %p123
      %p125 = scmp.ne.s32.totalorder %s117, %s119
      %p126 = scmp.eq.s32.totalorder %s25, 1
      %p127 = por %p125, %p126
      %p128 = scmp.ne.s32.totalorder %s119, %s120
      %p129 = scmp.eq.s32.totalorder %s25, 0
      %p130 = por %p128, %p129
      %p131 = scmp.ne.s32.totalorder %s119, %s120
      %p132 = scmp.eq.s32.totalorder %s26, 1
      %p133 = por %p131, %p132
      %p135 = scmp.ne.s32.totalorder %s120, %s134
      %p136 = scmp.eq.s32.totalorder %s26, 0
      %p137 = por %p135, %p136
      %s139 = sadd.s32 %s138, 1
      %p142 = scmp.eq.s32.totalorder %s20, 1
      %p143 = scmp.ne.s32.totalorder %s138, %s140
      %p144 = scmp.eq.s32.totalorder %s20, 0
      %p145 = por %p143, %p144
      %p146 = scmp.ne.s32.totalorder %s138, %s140
      %p147 = scmp.eq.s32.totalorder %s25, 1
      %p148 = por %p146, %p147
      %p149 = scmp.ne.s32.totalorder %s140, %s141
      %p150 = scmp.eq.s32.totalorder %s25, 0
      %p151 = por %p149, %p150
      %p152 = scmp.ne.s32.totalorder %s140, %s141
      %p153 = scmp.eq.s32.totalorder %s26, 1
      %p154 = por %p152, %p153
      %p156 = scmp.ne.s32.totalorder %s141, %s155
      %p157 = scmp.eq.s32.totalorder %s26, 0
      %p158 = por %p156, %p157
      %s160 = sadd.s32 %s159, 1
      %p163 = scmp.eq.s32.totalorder %s20, 1
      %p164 = scmp.ne.s32.totalorder %s159, %s161
      %p165 = scmp.eq.s32.totalorder %s20, 0
      %p166 = por %p164, %p165
      %p167 = scmp.ne.s32.totalorder %s159, %s161
      %p168 = scmp.eq.s32.totalorder %s25, 1
      %p169 = por %p167, %p168
      %p170 = scmp.ne.s32.totalorder %s161, %s162
      %p171 = scmp.eq.s32.totalorder %s25, 0
      %p172 = por %p170, %p171
      %p173 = scmp.ne.s32.totalorder %s161, %s162
      %p174 = scmp.eq.s32.totalorder %s26, 1
      %p175 = por %p173, %p174
      %p177 = scmp.ne.s32.totalorder %s162, %s176
      %p178 = scmp.eq.s32.totalorder %s26, 0
      %p179 = por %p177, %p178
      %s181 = sadd.s32 %s180, 1
      %p184 = scmp.eq.s32.totalorder %s20, 1
      %p185 = scmp.ne.s32.totalorder %s180, %s182
      %p186 = scmp.eq.s32.totalorder %s20, 0
      %p187 = por %p185, %p186
      %p188 = scmp.ne.s32.totalorder %s180, %s182
      %p189 = scmp.eq.s32.totalorder %s25, 1
      %p190 = por %p188, %p189
      %p191 = scmp.ne.s32.totalorder %s182, %s183
      %p192 = scmp.eq.s32.totalorder %s25, 0
      %p193 = por %p191, %p192
      %p194 = scmp.ne.s32.totalorder %s182, %s183
      %p195 = scmp.eq.s32.totalorder %s26, 1
      %p196 = por %p194, %p195
      %p198 = scmp.ne.s32.totalorder %s183, %s197
      %p199 = scmp.eq.s32.totalorder %s26, 0
      %p200 = por %p198, %p199
      %s202 = sadd.s32 %s201, 1
      %p205 = scmp.eq.s32.totalorder %s20, 1
      %p206 = scmp.ne.s32.totalorder %s201, %s203
      %p207 = scmp.eq.s32.totalorder %s20, 0
      %p208 = por %p206, %p207
      %p209 = scmp.ne.s32.totalorder %s201, %s203
      %p210 = scmp.eq.s32.totalorder %s25, 1
      %p211 = por %p209, %p210
      %p212 = scmp.ne.s32.totalorder %s203, %s204
      %p213 = scmp.eq.s32.totalorder %s25, 0
      %p214 = por %p212, %p213
      %p215 = scmp.ne.s32.totalorder %s203, %s204
      %p216 = scmp.eq.s32.totalorder %s26, 1
      %p217 = por %p215, %p216
      %p219 = scmp.ne.s32.totalorder %s204, %s218
      %p220 = scmp.eq.s32.totalorder %s26, 0
      %p221 = por %p219, %p220
      %s222 = ssub.s32 %s20, %s27
      %p223 = scmp.eq.s32.totalorder %s222, 0
      %s225 = sadd.s32 %s224, 1
      %s226 = scalar_select %p223, %s224, %s225
      %p229 = pneg %p223
      %p230 = scmp.eq.s32.totalorder %s20, 1
      %p231 = por %p229, %p230
      %p232 = scmp.ne.s32.totalorder %s224, %s227
      %p233 = scmp.eq.s32.totalorder %s20, 0
      %p234 = por %p232, %p233
      %p235 = scmp.ne.s32.totalorder %s224, %s227
      %p236 = scmp.eq.s32.totalorder %s25, 1
      %p237 = por %p235, %p236
      %p238 = scmp.ne.s32.totalorder %s227, %s228
      %p239 = scmp.eq.s32.totalorder %s25, 0
      %p240 = por %p238, %p239
      %p241 = scmp.ne.s32.totalorder %s227, %s228
      %p242 = scmp.eq.s32.totalorder %s26, 1
      %p243 = por %p241, %p242
      %p245 = scmp.ne.s32.totalorder %s228, %s244
      %p246 = scmp.eq.s32.totalorder %s26, 0
      %p247 = por %p245, %p246
      %p248 = scmp.le.s32.totalorder 1, %s20
      %p249 = scmp.lt.s32.totalorder %s20, 3
      %p250 = pnand %p248, %p249
      %p251 = pneg %p250
      // Predicated region
      $region9: #{tpu_custom_call.1} parent=5 // pred_check
        _
      $region10: #{tpu_custom_call.1} parent=5 // pred_check_branch
        %253 = sbr.rel (%p250) target = $region12
      $region11: #{tpu_custom_call.1} parent=5 // pred_region
        %s254 = ssub.s32 %s20, 1
        // Predicated region
        $region13: #{tpu_custom_call.1} parent=11 // pred_check
          %p255 = pneg %p67
        $region14: #{tpu_custom_call.1} parent=11 // pred_check_branch
          %257 = sbr.rel (%p255) target = $region16
        $region15: #{tpu_custom_call.1} parent=11 // pred_region
          _
        $region16: #{tpu_custom_call.1} parent=11 // pred_fallthru
          _
        // Predicated region
        $region17: #{tpu_custom_call.1} parent=11 // pred_check
          %p258 = pneg %p88
        $region18: #{tpu_custom_call.1} parent=11 // pred_check_branch
          %260 = sbr.rel (%p258) target = $region20
        $region19: #{tpu_custom_call.1} parent=11 // pred_region
          _
        $region20: #{tpu_custom_call.1} parent=11 // pred_fallthru
          _
        // Predicated region
        $region21: #{tpu_custom_call.1} parent=11 // pred_check
          %p261 = pneg %p109
        $region22: #{tpu_custom_call.1} parent=11 // pred_check_branch
          %263 = sbr.rel (%p261) target = $region24
        $region23: #{tpu_custom_call.1} parent=11 // pred_region
          _
        $region24: #{tpu_custom_call.1} parent=11 // pred_fallthru
          _
        // Predicated region
        $region25: #{tpu_custom_call.1} parent=11 // pred_check
          %p264 = pneg %p130
        $region26: #{tpu_custom_call.1} parent=11 // pred_check_branch
          %266 = sbr.rel (%p264) target = $region28
        $region27: #{tpu_custom_call.1} parent=11 // pred_region
          _
        $region28: #{tpu_custom_call.1} parent=11 // pred_fallthru
          _
        // Predicated region
        $region29: #{tpu_custom_call.1} parent=11 // pred_check
          %p267 = pneg %p151
        $region30: #{tpu_custom_call.1} parent=11 // pred_check_branch
          %269 = sbr.rel (%p267) target = $region32
        $region31: #{tpu_custom_call.1} parent=11 // pred_region
          _
        $region32: #{tpu_custom_call.1} parent=11 // pred_fallthru
          _
        // Predicated region
        $region33: #{tpu_custom_call.1} parent=11 // pred_check
          %p270 = pneg %p172
        $region34: #{tpu_custom_call.1} parent=11 // pred_check_branch
          %272 = sbr.rel (%p270) target = $region36
        $region35: #{tpu_custom_call.1} parent=11 // pred_region
          _
        $region36: #{tpu_custom_call.1} parent=11 // pred_fallthru
          _
        // Predicated region
        $region37: #{tpu_custom_call.1} parent=11 // pred_check
          %p273 = pneg %p193
        $region38: #{tpu_custom_call.1} parent=11 // pred_check_branch
          %275 = sbr.rel (%p273) target = $region40
        $region39: #{tpu_custom_call.1} parent=11 // pred_region
          _
        $region40: #{tpu_custom_call.1} parent=11 // pred_fallthru
          _
        // Predicated region
        $region41: #{tpu_custom_call.1} parent=11 // pred_check
          %p276 = pneg %p214
        $region42: #{tpu_custom_call.1} parent=11 // pred_check_branch
          %278 = sbr.rel (%p276) target = $region44
        $region43: #{tpu_custom_call.1} parent=11 // pred_region
          _
        $region44: #{tpu_custom_call.1} parent=11 // pred_fallthru
          _
      $region12: #{tpu_custom_call.1} parent=5 // pred_fallthru
        _
      %p279 = scmp.lt.s32.totalorder %s20, 2
      // Predicated region
      $region45: #{tpu_custom_call.1} parent=5 // pred_check
        %p280 = pneg %p279
      $region46: #{tpu_custom_call.1} parent=5 // pred_check_branch
        %282 = sbr.rel (%p280) target = $region48
      $region47: #{tpu_custom_call.1} parent=5 // pred_region
        // Predicated region
        $region49: #{tpu_custom_call.1} parent=47 // pred_check
          %p283 = pneg %p40
        $region50: #{tpu_custom_call.1} parent=47 // pred_check_branch
          %285 = sbr.rel (%p283) target = $region52
        $region51: #{tpu_custom_call.1} parent=47 // pred_region
          %s286 = smul.u32 128, %s20
          %s287 = ssub.s32 250, %s286
          %p288 = scmp.lt.s32.totalorder %s287, 128
          %s289 = scalar_select %p288, %s287, 128
          %s290 = smul.u32 128, %s289
          %p291 = scmp.lt.s32.totalorder %s286, 249
          %s292 = scalar_select %p291, %s286, 249
          %s293 = smul.addr %s292, 8
          %s294 = scalar_lea.vmem %s0, %s293
          %s295 = smul.u32 128, %s20
          %s296 = ssub.s32 250, %s295
          %p297 = scmp.lt.s32.totalorder %s296, 128
          %s298 = scalar_select %p297, %s296, 128
          %s299 = smul.u32 128, %s298
        $region52: #{tpu_custom_call.1} parent=47 // pred_fallthru
          _
      $region48: #{tpu_custom_call.1} parent=5 // pred_fallthru
        _
      %p300 = scmp.le.s32.totalorder 1, %s20
      %p301 = scmp.lt.s32.totalorder %s20, 3
      %p302 = pnand %p300, %p301
      %p303 = pneg %p302
      // Predicated region
      $region53: #{tpu_custom_call.1} parent=5 // pred_check
        _
      $region54: #{tpu_custom_call.1} parent=5 // pred_check_branch
        %305 = sbr.rel (%p302) target = $region56
      $region55: #{tpu_custom_call.1} parent=5 // pred_region
        %s306 = ssub.s32 %s20, 1
        %s307 = smul.u32 128, %s25
        %s308 = ssub.s32 250, %s307
        %p309 = scmp.lt.s32.totalorder %s308, 128
        %s310 = scalar_select %p309, %s308, 128
        %s311 = smul.u32 128, %s310
        %p312 = scmp.lt.s32.totalorder %s307, 249
        %s313 = scalar_select %p312, %s307, 249
        %s314 = smul.addr %s313, 8
        %s315 = scalar_lea.vmem %s0, %s314
        %p316 = pneg %p46
        %p317 = pneg %p43
        %p318 = pneg %p67
        %p319 = pneg %p64
        %p320 = pneg %p88
        %p321 = pneg %p85
        %p322 = pneg %p109
        %p323 = pneg %p106
        %p324 = pneg %p130
        %p325 = pneg %p127
        %p326 = pneg %p151
        %p327 = pneg %p148
        %p328 = pneg %p172
        %p329 = pneg %p169
        %p330 = pneg %p193
        %p331 = pneg %p190
        %p332 = pneg %p214
        %p333 = pneg %p211
        %p334 = pneg %p240
        %p335 = pneg %p237
        %s336 = sand.u32 %s227, 1
        %s337 = scalar_lea.sflag [#allocation4], %s336
        %s338 = sand.u32 %s227, 1
        %s339 = smul.addr %s338, 8
        %s340 = scalar_lea.vmem [#allocation3], %s339
        %s341 = smul.u32 128, %s25
        %s342 = ssub.s32 250, %s341
        %p343 = scmp.lt.s32.totalorder %s342, 128
        %s344 = scalar_select %p343, %s342, 128
        %s345 = smul.u32 128, %s344
        %p346 = scmp.lt.s32.totalorder %s341, 249
        %s347 = scalar_select %p346, %s341, 249
        %s348 = smul.addr %s347, 8
        %s349 = scalar_lea.vmem %s0, %s348
        %s350 = smul.u32 128, %s25
        %s351 = ssub.s32 250, %s350
        %p352 = scmp.lt.s32.totalorder %s351, 128
        %s353 = scalar_select %p352, %s351, 128
        %s354 = smul.u32 128, %s353
        %s355 = smul.u32 8, %s25
        %v357 = vld [vmem:[%s1] sm:$0xf]
        %v358 = vld [vmem:[%s1 + $0x4] sm:$0xf]
        %v359 = vld [vmem:[%s1 + $0x8] sm:$0xf]
        %v360 = vld [vmem:[%s1 + $0xc] sm:$0xf]
        %v361 = vld [vmem:[%s1 + $0x10] sm:$0xf]
        %v362 = vld [vmem:[%s1 + $0x14] sm:$0xf]
        %v363 = vld [vmem:[%s1 + $0x18] sm:$0xf]
        %v364 = vld [vmem:[%s1 + $0x1c] sm:$0xf]
        %v365 = vld [vmem:[%s3] sm:$0xf]
        %v366 = vld [vmem:[%s3 + $0x4] sm:$0xf]
        %v367 = vld [vmem:[%s3 + $0x8] sm:$0xf]
        %v368 = vld [vmem:[%s3 + $0xc] sm:$0xf]
        %v369 = vld [vmem:[%s5] sm:$0xf]
        %v370 = vld [vmem:[%s7] sm:$0xff]
        %v371 = vld [vmem:[%s2] sm:$0xff]
        %v372 = vld [vmem:[%s2 + $0x8] sm:$0xff]
        %v373 = vld [vmem:[%s2 + $0x10] sm:$0xff]
        %v374 = vld [vmem:[%s2 + $0x18] sm:$0xff]
        %v375 = vld [vmem:[%s2 + $0x20] sm:$0xff]
        %v376 = vld [vmem:[%s2 + $0x28] sm:$0xff]
        %v377 = vld [vmem:[%s2 + $0x30] sm:$0xff]
        %v378 = vld [vmem:[%s2 + $0x38] sm:$0xff]
        %v379 = vld [vmem:[%s4] sm:$0xff]
        %v380 = vld [vmem:[%s4 + $0x8] sm:$0xff]
        %v381 = vld [vmem:[%s4 + $0x10] sm:$0xff]
        %v382 = vld [vmem:[%s4 + $0x18] sm:$0xff]
        %v383 = vld [vmem:[%s6] sm:$0xff]
        %v384 = vld [vmem:[#allocation2] sm:$0x1]
        %v385 = vld [vmem:[%s349] sm:$0xff]
        %v386 = vld [vmem:[%s349 + $0x8] sm:$0xff]
        %v387 = vld [vmem:[%s349 + $0x10] sm:$0xff]
        %v388 = vld [vmem:[%s349 + $0x18] sm:$0xff]
        %v389 = vld [vmem:[%s349 + $0x20] sm:$0xff]
        %v390 = vld [vmem:[%s349 + $0x28] sm:$0xff]
        %v391 = vld [vmem:[%s349 + $0x30] sm:$0xff]
        %v392 = vld [vmem:[%s349 + $0x38] sm:$0xff]
        %v393 = vld [vmem:[%s349 + $0x40] sm:$0xff]
        %v394 = vld [vmem:[%s349 + $0x48] sm:$0xff]
        %v395 = vld [vmem:[%s349 + $0x50] sm:$0xff]
        %v396 = vld [vmem:[%s349 + $0x58] sm:$0xff]
        %v397 = vld [vmem:[%s349 + $0x60] sm:$0xff]
        %v398 = vld [vmem:[%s349 + $0x68] sm:$0xff]
        %v399 = vld [vmem:[%s349 + $0x70] sm:$0xff]
        %v400 = vld [vmem:[%s349 + $0x78] sm:$0xff]
        %v401 = vld [vmem:[%s349 + $0x80] sm:$0xff]
        %v402 = vld [vmem:[%s349 + $0x88] sm:$0xff]
        %v403 = vld [vmem:[%s349 + $0x90] sm:$0xff]
        %v404 = vld [vmem:[%s349 + $0x98] sm:$0xff]
        %v405 = vld [vmem:[%s349 + $0xa0] sm:$0xff]
        %v406 = vld [vmem:[%s349 + $0xa8] sm:$0xff]
        %v407 = vld [vmem:[%s349 + $0xb0] sm:$0xff]
        %v408 = vld [vmem:[%s349 + $0xb8] sm:$0xff]
        %v409 = vld [vmem:[%s349 + $0xc0] sm:$0xff]
        %v410 = vld [vmem:[%s349 + $0xc8] sm:$0xff]
        %v411 = vld [vmem:[%s349 + $0xd0] sm:$0xff]
        %v412 = vld [vmem:[%s349 + $0xd8] sm:$0xff]
        %v413 = vld [vmem:[%s349 + $0xe0] sm:$0xff]
        %v414 = vld [vmem:[%s349 + $0xe8] sm:$0xff]
        %v415 = vld [vmem:[%s349 + $0xf0] sm:$0xff]
        %v416 = vld [vmem:[%s349 + $0xf8] sm:$0xff]
        %v417 = vld [vmem:[%s349 + $0x100] sm:$0xff]
        %v418 = vld [vmem:[%s349 + $0x108] sm:$0xff]
        %v419 = vld [vmem:[%s349 + $0x110] sm:$0xff]
        %v420 = vld [vmem:[%s349 + $0x118] sm:$0xff]
        %v421 = vld [vmem:[%s349 + $0x120] sm:$0xff]
        %v422 = vld [vmem:[%s349 + $0x128] sm:$0xff]
        %v423 = vld [vmem:[%s349 + $0x130] sm:$0xff]
        %v424 = vld [vmem:[%s349 + $0x138] sm:$0xff]
        %v425 = vld [vmem:[%s349 + $0x140] sm:$0xff]
        %v426 = vld [vmem:[%s349 + $0x148] sm:$0xff]
        %v427 = vld [vmem:[%s349 + $0x150] sm:$0xff]
        %v428 = vld [vmem:[%s349 + $0x158] sm:$0xff]
        %v429 = vld [vmem:[%s349 + $0x160] sm:$0xff]
        %v430 = vld [vmem:[%s349 + $0x168] sm:$0xff]
        %v431 = vld [vmem:[%s349 + $0x170] sm:$0xff]
        %v432 = vld [vmem:[%s349 + $0x178] sm:$0xff]
        %v433 = vld [vmem:[%s349 + $0x180] sm:$0xff]
        %v434 = vld [vmem:[%s349 + $0x188] sm:$0xff]
        %v435 = vld [vmem:[%s349 + $0x190] sm:$0xff]
        %v436 = vld [vmem:[%s349 + $0x198] sm:$0xff]
        %v437 = vld [vmem:[%s349 + $0x1a0] sm:$0xff]
        %v438 = vld [vmem:[%s349 + $0x1a8] sm:$0xff]
        %v439 = vld [vmem:[%s349 + $0x1b0] sm:$0xff]
        %v440 = vld [vmem:[%s349 + $0x1b8] sm:$0xff]
        %v441 = vld [vmem:[%s349 + $0x1c0] sm:$0xff]
        %v442 = vld [vmem:[%s349 + $0x1c8] sm:$0xff]
        %v443 = vld [vmem:[%s349 + $0x1d0] sm:$0xff]
        %v444 = vld [vmem:[%s349 + $0x1d8] sm:$0xff]
        %v445 = vld [vmem:[%s349 + $0x1e0] sm:$0xff]
        %v446 = vld [vmem:[%s349 + $0x1e8] sm:$0xff]
        %v447 = vld [vmem:[%s349 + $0x1f0] sm:$0xff]
        %v448 = vld [vmem:[%s349 + $0x1f8] sm:$0xff]
        %v449 = vpack.c.bf16 %v386, %v385
        %v450 = vpack.c.bf16 %v388, %v387
        %v451 = vpack.c.bf16 %v390, %v389
        %v452 = vpack.c.bf16 %v392, %v391
        %v453 = vpack.c.bf16 %v394, %v393
        %v454 = vpack.c.bf16 %v396, %v395
        %v455 = vpack.c.bf16 %v398, %v397
        %v456 = vpack.c.bf16 %v400, %v399
        %v457 = vpack.c.bf16 %v402, %v401
        %v458 = vpack.c.bf16 %v404, %v403
        %v459 = vpack.c.bf16 %v406, %v405
        %v460 = vpack.c.bf16 %v408, %v407
        %v461 = vpack.c.bf16 %v410, %v409
        %v462 = vpack.c.bf16 %v412, %v411
        %v463 = vpack.c.bf16 %v414, %v413
        %v464 = vpack.c.bf16 %v416, %v415
        %v465 = vpack.c.bf16 %v418, %v417
        %v466 = vpack.c.bf16 %v420, %v419
        %v467 = vpack.c.bf16 %v422, %v421
        %v468 = vpack.c.bf16 %v424, %v423
        %v469 = vpack.c.bf16 %v426, %v425
        %v470 = vpack.c.bf16 %v428, %v427
        %v471 = vpack.c.bf16 %v430, %v429
        %v472 = vpack.c.bf16 %v432, %v431
        %v473 = vpack.c.bf16 %v434, %v433
        %v474 = vpack.c.bf16 %v436, %v435
        %v475 = vpack.c.bf16 %v438, %v437
        %v476 = vpack.c.bf16 %v440, %v439
        %v477 = vpack.c.bf16 %v442, %v441
        %v478 = vpack.c.bf16 %v444, %v443
        %v479 = vpack.c.bf16 %v446, %v445
        %v480 = vpack.c.bf16 %v448, %v447
        %482 = vset.pattern.permute.xlu0 0
        %483 = vperm.xlu0 %482, %v371
        %v484 = vpop.permute.xlu0 %483
        %487 = vset.pattern.permute.xlu0 0
        %488 = vperm.xlu0 %487, %v372
        %v489 = vpop.permute.xlu0 %488
        %492 = vset.pattern.permute.xlu0 0
        %493 = vperm.xlu0 %492, %v373
        %v494 = vpop.permute.xlu0 %493
        %497 = vset.pattern.permute.xlu0 0
        %498 = vperm.xlu0 %497, %v374
        %v499 = vpop.permute.xlu0 %498
        %502 = vset.pattern.permute.xlu0 0
        %503 = vperm.xlu0 %502, %v375
        %v504 = vpop.permute.xlu0 %503
        %507 = vset.pattern.permute.xlu0 0
        %508 = vperm.xlu0 %507, %v376
        %v509 = vpop.permute.xlu0 %508
        %512 = vset.pattern.permute.xlu0 0
        %513 = vperm.xlu0 %512, %v377
        %v514 = vpop.permute.xlu0 %513
        %517 = vset.pattern.permute.xlu0 0
        %518 = vperm.xlu0 %517, %v378
        %v519 = vpop.permute.xlu0 %518
        %v529 = vunpack.c.l.b16 %v357
        %v530 = vunpack.c.l.b16 %v358
        %v531 = vunpack.c.l.b16 %v359
        %v532 = vunpack.c.l.b16 %v360
        %v533 = vunpack.c.l.b16 %v361
        %v534 = vunpack.c.l.b16 %v362
        %v535 = vunpack.c.l.b16 %v363
        %v536 = vunpack.c.l.b16 %v364
        %v537 = vpack.c.b16 %v530, %v529
        %v538 = vpack.c.b16 %v532, %v531
        %v539 = vpack.c.b16 %v534, %v533
        %v540 = vpack.c.b16 %v536, %v535
        %vm541 = vcmask 261120
        %v543 = vsel %vm541, %v537, 0
        %v546 = vsel %vm541, %v538, 0
        %v549 = vsel %vm541, %v539, 0
        %v552 = vsel %vm541, %v540, 0
        %v555 = vsel %vm541, %v449, 0
        %v558 = vsel %vm541, %v450, 0
        %v561 = vsel %vm541, %v451, 0
        %v564 = vsel %vm541, %v452, 0
        %v567 = vsel %vm541, %v453, 0
        %v570 = vsel %vm541, %v454, 0
        %v573 = vsel %vm541, %v455, 0
        %v576 = vsel %vm541, %v456, 0
        %v579 = vsel %vm541, %v457, 0
        %v582 = vsel %vm541, %v458, 0
        %v585 = vsel %vm541, %v459, 0
        %v588 = vsel %vm541, %v460, 0
        %v591 = vsel %vm541, %v461, 0
        %v594 = vsel %vm541, %v462, 0
        %v597 = vsel %vm541, %v463, 0
        %v600 = vsel %vm541, %v464, 0
        %v603 = vsel %vm541, %v465, 0
        %v606 = vsel %vm541, %v466, 0
        %v609 = vsel %vm541, %v467, 0
        %v612 = vsel %vm541, %v468, 0
        %v615 = vsel %vm541, %v469, 0
        %v618 = vsel %vm541, %v470, 0
        %v621 = vsel %vm541, %v471, 0
        %v624 = vsel %vm541, %v472, 0
        %v627 = vsel %vm541, %v473, 0
        %v630 = vsel %vm541, %v474, 0
        %v633 = vsel %vm541, %v475, 0
        %v636 = vsel %vm541, %v476, 0
        %v639 = vsel %vm541, %v477, 0
        %v642 = vsel %vm541, %v478, 0
        %v645 = vsel %vm541, %v479, 0
        %v648 = vsel %vm541, %v480, 0
        %650 = vmatprep.subr.bf16.mxu0 0
        %651 = vmatpush1.bf16.xpose.msra.mxu0 %v555
        %652 = vmatprep.subr.bf16.mxu0 0
        %653 = vmatpush1.bf16.xpose.msra.mxu0 %v558
        %654 = vmatprep.subr.bf16.mxu0 0
        %655 = vmatpush1.bf16.xpose.msra.mxu0 %v561
        %656 = vmatprep.subr.bf16.mxu0 0
        %657 = vmatpush1.bf16.xpose.msra.mxu0 %v564
        %658 = vmatprep.subr.bf16.mxu0 0
        %659 = vmatpush1.bf16.xpose.msra.mxu0 %v567
        %660 = vmatprep.subr.bf16.mxu0 0
        %661 = vmatpush1.bf16.xpose.msra.mxu0 %v570
        %662 = vmatprep.subr.bf16.mxu0 0
        %663 = vmatpush1.bf16.xpose.msra.mxu0 %v573
        %664 = vmatprep.subr.bf16.mxu0 0
        %665 = vmatpush1.bf16.xpose.msra.mxu0 %v576
        %666 = vmatprep.subr.bf16.mxu0 0
        %667 = vmatpush1.bf16.xpose.msra.mxu0 %v579
        %668 = vmatprep.subr.bf16.mxu0 0
        %669 = vmatpush1.bf16.xpose.msra.mxu0 %v582
        %670 = vmatprep.subr.bf16.mxu0 0
        %671 = vmatpush1.bf16.xpose.msra.mxu0 %v585
        %672 = vmatprep.subr.bf16.mxu0 0
        %673 = vmatpush1.bf16.xpose.msra.mxu0 %v588
        %674 = vmatprep.subr.bf16.mxu0 0
        %675 = vmatpush1.bf16.xpose.msra.mxu0 %v591
        %676 = vmatprep.subr.bf16.mxu0 0
        %677 = vmatpush1.bf16.xpose.msra.mxu0 %v594
        %678 = vmatprep.subr.bf16.mxu0 0
        %679 = vmatpush1.bf16.xpose.msra.mxu0 %v597
        %680 = vmatprep.subr.bf16.mxu0 0
        %681 = vmatpush1.bf16.xpose.msra.mxu0 %v600
        %682 = vmatprep.mubr.bf16.mxu0 0
        %683 = vmatmul.mubr.bf16.gmra.mrb[0].mxu0 %v543
        %v684 = vpop.f32.mrb[0].mxu0
        %v685 = vadd.f32 %v484, %v684
        %v686 = vpop.f32.mrb[0].mxu0
        %v687 = vadd.f32 %v484, %v686
        %v688 = vpop.f32.mrb[0].mxu0
        %v689 = vadd.f32 %v489, %v688
        %v690 = vpop.f32.mrb[0].mxu0
        %v691 = vadd.f32 %v489, %v690
        %692 = vmatprep.mubr.bf16.mxu0 0
        %693 = vmatmul.mubr.bf16.gmra.mrb[0].mxu0 %v546
        %v694 = vpop.f32.mrb[0].mxu0
        %v695 = vadd.f32 %v494, %v694
        %v696 = vpop.f32.mrb[0].mxu0
        %v697 = vadd.f32 %v494, %v696
        %v698 = vpop.f32.mrb[0].mxu0
        %v699 = vadd.f32 %v499, %v698
        %v700 = vpop.f32.mrb[0].mxu0
        %v701 = vadd.f32 %v499, %v700
        %702 = vmatprep.mubr.bf16.mxu0 0
        %703 = vmatmul.mubr.bf16.gmra.mrb[0].mxu0 %v549
        %v704 = vpop.f32.mrb[0].mxu0
        %v705 = vadd.f32 %v504, %v704
        %v706 = vpop.f32.mrb[0].mxu0
        %v707 = vadd.f32 %v504, %v706
        %v708 = vpop.f32.mrb[0].mxu0
        %v709 = vadd.f32 %v509, %v708
        %v710 = vpop.f32.mrb[0].mxu0
        %v711 = vadd.f32 %v509, %v710
        %712 = vmatprep.mubr.bf16.mxu0 0
        %713 = vmatmul.mubr.bf16.gmra.mrb[0].mxu0 %v552
        %v714 = vpop.f32.mrb[0].mxu0
        %v715 = vadd.f32 %v514, %v714
        %v716 = vpop.f32.mrb[0].mxu0
        %v717 = vadd.f32 %v514, %v716
        %v718 = vpop.f32.mrb[0].mxu0
        %v719 = vadd.f32 %v519, %v718
        %v720 = vpop.f32.mrb[0].mxu0
        %v721 = vadd.f32 %v519, %v720
        %722 = vdwg.mxu0
        %723 = vmatprep.subr.bf16.mxu0 0
        %724 = vmatpush1.bf16.xpose.msra.mxu0 %v603
        %725 = vmatprep.subr.bf16.mxu0 0
        %726 = vmatpush1.bf16.xpose.msra.mxu0 %v606
        %727 = vmatprep.subr.bf16.mxu0 0
        %728 = vmatpush1.bf16.xpose.msra.mxu0 %v609
        %729 = vmatprep.subr.bf16.mxu0 0
        %730 = vmatpush1.bf16.xpose.msra.mxu0 %v612
        %731 = vmatprep.subr.bf16.mxu0 0
        %732 = vmatpush1.bf16.xpose.msra.mxu0 %v615
        %733 = vmatprep.subr.bf16.mxu0 0
        %734 = vmatpush1.bf16.xpose.msra.mxu0 %v618
        %735 = vmatprep.subr.bf16.mxu0 0
        %736 = vmatpush1.bf16.xpose.msra.mxu0 %v621
        %737 = vmatprep.subr.bf16.mxu0 0
        %738 = vmatpush1.bf16.xpose.msra.mxu0 %v624
        %739 = vmatprep.subr.bf16.mxu0 0
        %740 = vmatpush1.bf16.xpose.msra.mxu0 %v627
        %741 = vmatprep.subr.bf16.mxu0 0
        %742 = vmatpush1.bf16.xpose.msra.mxu0 %v630
        %743 = vmatprep.subr.bf16.mxu0 0
        %744 = vmatpush1.bf16.xpose.msra.mxu0 %v633
        %745 = vmatprep.subr.bf16.mxu0 0
        %746 = vmatpush1.bf16.xpose.msra.mxu0 %v636
        %747 = vmatprep.subr.bf16.mxu0 0
        %748 = vmatpush1.bf16.xpose.msra.mxu0 %v639
        %749 = vmatprep.subr.bf16.mxu0 0
        %750 = vmatpush1.bf16.xpose.msra.mxu0 %v642
        %751 = vmatprep.subr.bf16.mxu0 0
        %752 = vmatpush1.bf16.xpose.msra.mxu0 %v645
        %753 = vmatprep.subr.bf16.mxu0 0
        %754 = vmatpush1.bf16.xpose.msra.mxu0 %v648
        %755 = vmatprep.mubr.bf16.mxu0 0
        %756 = vmatmul.mubr.bf16.gmra.mrb[0].mxu0 %v543
        %v757 = vpop.f32.mrb[0].mxu0
        %v758 = vadd.f32 %v484, %v757
        %v759 = vpop.f32.mrb[0].mxu0
        %v760 = vadd.f32 %v484, %v759
        %v761 = vpop.f32.mrb[0].mxu0
        %v762 = vadd.f32 %v489, %v761
        %v763 = vpop.f32.mrb[0].mxu0
        %v764 = vadd.f32 %v489, %v763
        %765 = vmatprep.mubr.bf16.mxu0 0
        %766 = vmatmul.mubr.bf16.gmra.mrb[0].mxu0 %v546
        %v767 = vpop.f32.mrb[0].mxu0
        %v768 = vadd.f32 %v494, %v767
        %v769 = vpop.f32.mrb[0].mxu0
        %v770 = vadd.f32 %v494, %v769
        %v771 = vpop.f32.mrb[0].mxu0
        %v772 = vadd.f32 %v499, %v771
        %v773 = vpop.f32.mrb[0].mxu0
        %v774 = vadd.f32 %v499, %v773
        %775 = vmatprep.mubr.bf16.mxu0 0
        %776 = vmatmul.mubr.bf16.gmra.mrb[0].mxu0 %v549
        %v777 = vpop.f32.mrb[0].mxu0
        %v778 = vadd.f32 %v504, %v777
        %v779 = vpop.f32.mrb[0].mxu0
        %v780 = vadd.f32 %v504, %v779
        %v781 = vpop.f32.mrb[0].mxu0
        %v782 = vadd.f32 %v509, %v781
        %v783 = vpop.f32.mrb[0].mxu0
        %v784 = vadd.f32 %v509, %v783
        %785 = vmatprep.mubr.bf16.mxu0 0
        %786 = vmatmul.mubr.bf16.gmra.mrb[0].mxu0 %v552
        %v787 = vpop.f32.mrb[0].mxu0
        %v788 = vadd.f32 %v514, %v787
        %v789 = vpop.f32.mrb[0].mxu0
        %v790 = vadd.f32 %v514, %v789
        %v791 = vpop.f32.mrb[0].mxu0
        %v792 = vadd.f32 %v519, %v791
        %v793 = vpop.f32.mrb[0].mxu0
        %v794 = vadd.f32 %v519, %v793
        %795 = vdwg.mxu0
        %v796 = vsub.f32 0.0, %v685
        %v797 = vsub.f32 0.0, %v687
        %v798 = vsub.f32 0.0, %v758
        %v799 = vsub.f32 0.0, %v760
        %v800 = vsub.f32 0.0, %v689
        %v801 = vsub.f32 0.0, %v691
        %v802 = vsub.f32 0.0, %v762
        %v803 = vsub.f32 0.0, %v764
        %v804 = vsub.f32 0.0, %v695
        %v805 = vsub.f32 0.0, %v697
        %v806 = vsub.f32 0.0, %v768
        %v807 = vsub.f32 0.0, %v770
        %v808 = vsub.f32 0.0, %v699
        %v809 = vsub.f32 0.0, %v701
        %v810 = vsub.f32 0.0, %v772
        %v811 = vsub.f32 0.0, %v774
        %v812 = vsub.f32 0.0, %v705
        %v813 = vsub.f32 0.0, %v707
        %v814 = vsub.f32 0.0, %v778
        %v815 = vsub.f32 0.0, %v780
        %v816 = vsub.f32 0.0, %v709
        %v817 = vsub.f32 0.0, %v711
        %v818 = vsub.f32 0.0, %v782
        %v819 = vsub.f32 0.0, %v784
        %v820 = vsub.f32 0.0, %v715
        %v821 = vsub.f32 0.0, %v717
        %v822 = vsub.f32 0.0, %v788
        %v823 = vsub.f32 0.0, %v790
        %v824 = vsub.f32 0.0, %v719
        %v825 = vsub.f32 0.0, %v721
        %v826 = vsub.f32 0.0, %v792
        %v827 = vsub.f32 0.0, %v794
        %v828 = vmul.f32 %v796, 1.442695
        %v829 = vpow.pop %v828
        %v830 = vmul.f32 %v797, 1.442695
        %v831 = vpow.pop %v830
        %v832 = vmul.f32 %v798, 1.442695
        %v833 = vpow.pop %v832
        %v834 = vmul.f32 %v799, 1.442695
        %v835 = vpow.pop %v834
        %v836 = vmul.f32 %v800, 1.442695
        %v837 = vpow.pop %v836
        %v838 = vmul.f32 %v801, 1.442695
        %v839 = vpow.pop %v838
        %v840 = vmul.f32 %v802, 1.442695
        %v841 = vpow.pop %v840
        %v842 = vmul.f32 %v803, 1.442695
        %v843 = vpow.pop %v842
        %v844 = vmul.f32 %v804, 1.442695
        %v845 = vpow.pop %v844
        %v846 = vmul.f32 %v805, 1.442695
        %v847 = vpow.pop %v846
        %v848 = vmul.f32 %v806, 1.442695
        %v849 = vpow.pop %v848
        %v850 = vmul.f32 %v807, 1.442695
        %v851 = vpow.pop %v850
        %v852 = vmul.f32 %v808, 1.442695
        %v853 = vpow.pop %v852
        %v854 = vmul.f32 %v809, 1.442695
        %v855 = vpow.pop %v854
        %v856 = vmul.f32 %v810, 1.442695
        %v857 = vpow.pop %v856
        %v858 = vmul.f32 %v811, 1.442695
        %v859 = vpow.pop %v858
        %v860 = vmul.f32 %v812, 1.442695
        %v861 = vpow.pop %v860
        %v862 = vmul.f32 %v813, 1.442695
        %v863 = vpow.pop %v862
        %v864 = vmul.f32 %v814, 1.442695
        %v865 = vpow.pop %v864
        %v866 = vmul.f32 %v815, 1.442695
        %v867 = vpow.pop %v866
        %v868 = vmul.f32 %v816, 1.442695
        %v869 = vpow.pop %v868
        %v870 = vmul.f32 %v817, 1.442695
        %v871 = vpow.pop %v870
        %v872 = vmul.f32 %v818, 1.442695
        %v873 = vpow.pop %v872
        %v874 = vmul.f32 %v819, 1.442695
        %v875 = vpow.pop %v874
        %v876 = vmul.f32 %v820, 1.442695
        %v877 = vpow.pop %v876
        %v878 = vmul.f32 %v821, 1.442695
        %v879 = vpow.pop %v878
        %v880 = vmul.f32 %v822, 1.442695
        %v881 = vpow.pop %v880
        %v882 = vmul.f32 %v823, 1.442695
        %v883 = vpow.pop %v882
        %v884 = vmul.f32 %v824, 1.442695
        %v885 = vpow.pop %v884
        %v886 = vmul.f32 %v825, 1.442695
        %v887 = vpow.pop %v886
        %v888 = vmul.f32 %v826, 1.442695
        %v889 = vpow.pop %v888
        %v890 = vmul.f32 %v827, 1.442695
        %v891 = vpow.pop %v890
        %v892 = vadd.f32 %v829, 1.0
        %v893 = vadd.f32 %v831, 1.0
        %v894 = vadd.f32 %v833, 1.0
        %v895 = vadd.f32 %v835, 1.0
        %v896 = vadd.f32 %v837, 1.0
        %v897 = vadd.f32 %v839, 1.0
        %v898 = vadd.f32 %v841, 1.0
        %v899 = vadd.f32 %v843, 1.0
        %v900 = vadd.f32 %v845, 1.0
        %v901 = vadd.f32 %v847, 1.0
        %v902 = vadd.f32 %v849, 1.0
        %v903 = vadd.f32 %v851, 1.0
        %v904 = vadd.f32 %v853, 1.0
        %v905 = vadd.f32 %v855, 1.0
        %v906 = vadd.f32 %v857, 1.0
        %v907 = vadd.f32 %v859, 1.0
        %v908 = vadd.f32 %v861, 1.0
        %v909 = vadd.f32 %v863, 1.0
        %v910 = vadd.f32 %v865, 1.0
        %v911 = vadd.f32 %v867, 1.0
        %v912 = vadd.f32 %v869, 1.0
        %v913 = vadd.f32 %v871, 1.0
        %v914 = vadd.f32 %v873, 1.0
        %v915 = vadd.f32 %v875, 1.0
        %v916 = vadd.f32 %v877, 1.0
        %v917 = vadd.f32 %v879, 1.0
        %v918 = vadd.f32 %v881, 1.0
        %v919 = vadd.f32 %v883, 1.0
        %v920 = vadd.f32 %v885, 1.0
        %v921 = vadd.f32 %v887, 1.0
        %v922 = vadd.f32 %v889, 1.0
        %v923 = vadd.f32 %v891, 1.0
        %v924 = vrcp.pop %v892
        %v925 = vrcp.pop %v893
        %v926 = vrcp.pop %v894
        %v927 = vrcp.pop %v895
        %v928 = vrcp.pop %v896
        %v929 = vrcp.pop %v897
        %v930 = vrcp.pop %v898
        %v931 = vrcp.pop %v899
        %v932 = vrcp.pop %v900
        %v933 = vrcp.pop %v901
        %v934 = vrcp.pop %v902
        %v935 = vrcp.pop %v903
        %v936 = vrcp.pop %v904
        %v937 = vrcp.pop %v905
        %v938 = vrcp.pop %v906
        %v939 = vrcp.pop %v907
        %v940 = vrcp.pop %v908
        %v941 = vrcp.pop %v909
        %v942 = vrcp.pop %v910
        %v943 = vrcp.pop %v911
        %v944 = vrcp.pop %v912
        %v945 = vrcp.pop %v913
        %v946 = vrcp.pop %v914
        %v947 = vrcp.pop %v915
        %v948 = vrcp.pop %v916
        %v949 = vrcp.pop %v917
        %v950 = vrcp.pop %v918
        %v951 = vrcp.pop %v919
        %v952 = vrcp.pop %v920
        %v953 = vrcp.pop %v921
        %v954 = vrcp.pop %v922
        %v955 = vrcp.pop %v923
        %v956 = vmul.f32 %v685, %v924
        %v957 = vmul.f32 %v687, %v925
        %v958 = vmul.f32 %v758, %v926
        %v959 = vmul.f32 %v760, %v927
        %v960 = vmul.f32 %v689, %v928
        %v961 = vmul.f32 %v691, %v929
        %v962 = vmul.f32 %v762, %v930
        %v963 = vmul.f32 %v764, %v931
        %v964 = vmul.f32 %v695, %v932
        %v965 = vmul.f32 %v697, %v933
        %v966 = vmul.f32 %v768, %v934
        %v967 = vmul.f32 %v770, %v935
        %v968 = vmul.f32 %v699, %v936
        %v969 = vmul.f32 %v701, %v937
        %v970 = vmul.f32 %v772, %v938
        %v971 = vmul.f32 %v774, %v939
        %v972 = vmul.f32 %v705, %v940
        %v973 = vmul.f32 %v707, %v941
        %v974 = vmul.f32 %v778, %v942
        %v975 = vmul.f32 %v780, %v943
        %v976 = vmul.f32 %v709, %v944
        %v977 = vmul.f32 %v711, %v945
        %v978 = vmul.f32 %v782, %v946
        %v979 = vmul.f32 %v784, %v947
        %v980 = vmul.f32 %v715, %v948
        %v981 = vmul.f32 %v717, %v949
        %v982 = vmul.f32 %v788, %v950
        %v983 = vmul.f32 %v790, %v951
        %v984 = vmul.f32 %v719, %v952
        %v985 = vmul.f32 %v721, %v953
        %v986 = vmul.f32 %v792, %v954
        %v987 = vmul.f32 %v794, %v955
        %v988 = vpack.c.bf16 %v960, %v956
        %v989 = vpack.c.bf16 %v961, %v957
        %v990 = vpack.c.bf16 %v962, %v958
        %v991 = vpack.c.bf16 %v963, %v959
        %v992 = vpack.c.bf16 %v968, %v964
        %v993 = vpack.c.bf16 %v969, %v965
        %v994 = vpack.c.bf16 %v970, %v966
        %v995 = vpack.c.bf16 %v971, %v967
        %v996 = vpack.c.bf16 %v976, %v972
        %v997 = vpack.c.bf16 %v977, %v973
        %v998 = vpack.c.bf16 %v978, %v974
        %v999 = vpack.c.bf16 %v979, %v975
        %v1000 = vpack.c.bf16 %v984, %v980
        %v1001 = vpack.c.bf16 %v985, %v981
        %v1002 = vpack.c.bf16 %v986, %v982
        %v1003 = vpack.c.bf16 %v987, %v983
        %1005 = vset.pattern.permute.xlu0 0
        %1006 = vperm.xlu0 %1005, %v379
        %v1007 = vpop.permute.xlu0 %1006
        %1010 = vset.pattern.permute.xlu0 0
        %1011 = vperm.xlu0 %1010, %v380
        %v1012 = vpop.permute.xlu0 %1011
        %1015 = vset.pattern.permute.xlu0 0
        %1016 = vperm.xlu0 %1015, %v381
        %v1017 = vpop.permute.xlu0 %1016
        %1020 = vset.pattern.permute.xlu0 0
        %1021 = vperm.xlu0 %1020, %v382
        %v1022 = vpop.permute.xlu0 %1021
        %v1028 = vunpack.c.l.b16 %v365
        %v1029 = vunpack.c.l.b16 %v366
        %v1030 = vunpack.c.l.b16 %v367
        %v1031 = vunpack.c.l.b16 %v368
        %v1032 = vpack.c.b16 %v1029, %v1028
        %v1033 = vpack.c.b16 %v1031, %v1030
        %vm1034 = vcmask 523264
        %v1036 = vsel %vm1034, %v1032, 0
        %v1039 = vsel %vm1034, %v1033, 0
        %1041 = vmatprep.subr.bf16.mxu0 %v989
        %1042 = vmatpush1.bf16.msra.mxu0 %v988
        %1043 = vmatprep.subr.bf16.mxu0 %v993
        %1044 = vmatpush1.bf16.msra.mxu0 %v992
        %1045 = vmatprep.subr.bf16.mxu0 %v997
        %1046 = vmatpush1.bf16.msra.mxu0 %v996
        %1047 = vmatprep.subr.bf16.mxu0 %v1001
        %1048 = vmatpush1.bf16.msra.mxu0 %v1000
        %1049 = vmatprep.subr.bf16.mxu0 0
        %1050 = vmatpush1.bf16.msra.mxu0 0
        %1051 = vmatprep.subr.bf16.mxu0 0
        %1052 = vmatpush1.bf16.msra.mxu0 0
        %1053 = vmatprep.subr.bf16.mxu0 0
        %1054 = vmatpush1.bf16.msra.mxu0 0
        %1055 = vmatprep.subr.bf16.mxu0 0
        %1056 = vmatpush1.bf16.msra.mxu0 0
        %1057 = vmatprep.subr.bf16.mxu0 0
        %1058 = vmatpush1.bf16.msra.mxu0 0
        %1059 = vmatprep.subr.bf16.mxu0 0
        %1060 = vmatpush1.bf16.msra.mxu0 0
        %1061 = vmatprep.subr.bf16.mxu0 0
        %1062 = vmatpush1.bf16.msra.mxu0 0
        %1063 = vmatprep.subr.bf16.mxu0 0
        %1064 = vmatpush1.bf16.msra.mxu0 0
        %1065 = vmatprep.subr.bf16.mxu0 0
        %1066 = vmatpush1.bf16.msra.mxu0 0
        %1067 = vmatprep.subr.bf16.mxu0 0
        %1068 = vmatpush1.bf16.msra.mxu0 0
        %1069 = vmatprep.subr.bf16.mxu0 0
        %1070 = vmatpush1.bf16.msra.mxu0 0
        %1071 = vmatprep.subr.bf16.mxu0 0
        %1072 = vmatpush1.bf16.msra.mxu0 0
        %1073 = vmatprep.mubr.bf16.mxu0 0
        %1074 = vmatmul.mubr.bf16.gmra.mrb[0].mxu0 %v1036
        %v1075 = vpop.f32.mrb[0].mxu0
        %v1076 = vadd.f32 %v1007, %v1075
        %v1077 = vpop.f32.mrb[0].mxu0
        %v1078 = vadd.f32 %v1007, %v1077
        %v1079 = vpop.f32.mrb[0].mxu0
        %v1080 = vadd.f32 %v1012, %v1079
        %v1081 = vpop.f32.mrb[0].mxu0
        %v1082 = vadd.f32 %v1012, %v1081
        %1083 = vmatprep.mubr.bf16.mxu0 0
        %1084 = vmatmul.mubr.bf16.gmra.mrb[0].mxu0 %v1039
        %v1085 = vpop.f32.mrb[0].mxu0
        %v1086 = vadd.f32 %v1017, %v1085
        %v1087 = vpop.f32.mrb[0].mxu0
        %v1088 = vadd.f32 %v1017, %v1087
        %v1089 = vpop.f32.mrb[0].mxu0
        %v1090 = vadd.f32 %v1022, %v1089
        %v1091 = vpop.f32.mrb[0].mxu0
        %v1092 = vadd.f32 %v1022, %v1091
        %1093 = vdwg.mxu0
        %1094 = vmatprep.subr.bf16.mxu0 %v991
        %1095 = vmatpush1.bf16.msra.mxu0 %v990
        %1096 = vmatprep.subr.bf16.mxu0 %v995
        %1097 = vmatpush1.bf16.msra.mxu0 %v994
        %1098 = vmatprep.subr.bf16.mxu0 %v999
        %1099 = vmatpush1.bf16.msra.mxu0 %v998
        %1100 = vmatprep.subr.bf16.mxu0 %v1003
        %1101 = vmatpush1.bf16.msra.mxu0 %v1002
        %1102 = vmatprep.subr.bf16.mxu0 0
        %1103 = vmatpush1.bf16.msra.mxu0 0
        %1104 = vmatprep.subr.bf16.mxu0 0
        %1105 = vmatpush1.bf16.msra.mxu0 0
        %1106 = vmatprep.subr.bf16.mxu0 0
        %1107 = vmatpush1.bf16.msra.mxu0 0
        %1108 = vmatprep.subr.bf16.mxu0 0
        %1109 = vmatpush1.bf16.msra.mxu0 0
        %1110 = vmatprep.subr.bf16.mxu0 0
        %1111 = vmatpush1.bf16.msra.mxu0 0
        %1112 = vmatprep.subr.bf16.mxu0 0
        %1113 = vmatpush1.bf16.msra.mxu0 0
        %1114 = vmatprep.subr.bf16.mxu0 0
        %1115 = vmatpush1.bf16.msra.mxu0 0
        %1116 = vmatprep.subr.bf16.mxu0 0
        %1117 = vmatpush1.bf16.msra.mxu0 0
        %1118 = vmatprep.subr.bf16.mxu0 0
        %1119 = vmatpush1.bf16.msra.mxu0 0
        %1120 = vmatprep.subr.bf16.mxu0 0
        %1121 = vmatpush1.bf16.msra.mxu0 0
        %1122 = vmatprep.subr.bf16.mxu0 0
        %1123 = vmatpush1.bf16.msra.mxu0 0
        %1124 = vmatprep.subr.bf16.mxu0 0
        %1125 = vmatpush1.bf16.msra.mxu0 0
        %1126 = vmatprep.mubr.bf16.mxu0 0
        %1127 = vmatmul.mubr.bf16.gmra.mrb[0].mxu0 %v1036
        %v1128 = vpop.f32.mrb[0].mxu0
        %v1129 = vadd.f32 %v1007, %v1128
        %v1130 = vpop.f32.mrb[0].mxu0
        %v1131 = vadd.f32 %v1007, %v1130
        %v1132 = vpop.f32.mrb[0].mxu0
        %v1133 = vadd.f32 %v1012, %v1132
        %v1134 = vpop.f32.mrb[0].mxu0
        %v1135 = vadd.f32 %v1012, %v1134
        %1136 = vmatprep.mubr.bf16.mxu0 0
        %1137 = vmatmul.mubr.bf16.gmra.mrb[0].mxu0 %v1039
        %v1138 = vpop.f32.mrb[0].mxu0
        %v1139 = vadd.f32 %v1017, %v1138
        %v1140 = vpop.f32.mrb[0].mxu0
        %v1141 = vadd.f32 %v1017, %v1140
        %v1142 = vpop.f32.mrb[0].mxu0
        %v1143 = vadd.f32 %v1022, %v1142
        %v1144 = vpop.f32.mrb[0].mxu0
        %v1145 = vadd.f32 %v1022, %v1144
        %1146 = vdwg.mxu0
        %v1147 = vsub.f32 0.0, %v1076
        %v1148 = vsub.f32 0.0, %v1078
        %v1149 = vsub.f32 0.0, %v1129
        %v1150 = vsub.f32 0.0, %v1131
        %v1151 = vsub.f32 0.0, %v1080
        %v1152 = vsub.f32 0.0, %v1082
        %v1153 = vsub.f32 0.0, %v1133
        %v1154 = vsub.f32 0.0, %v1135
        %v1155 = vsub.f32 0.0, %v1086
        %v1156 = vsub.f32 0.0, %v1088
        %v1157 = vsub.f32 0.0, %v1139
        %v1158 = vsub.f32 0.0, %v1141
        %v1159 = vsub.f32 0.0, %v1090
        %v1160 = vsub.f32 0.0, %v1092
        %v1161 = vsub.f32 0.0, %v1143
        %v1162 = vsub.f32 0.0, %v1145
        %v1163 = vmul.f32 %v1147, 1.442695
        %v1164 = vpow.pop %v1163
        %v1165 = vmul.f32 %v1148, 1.442695
        %v1166 = vpow.pop %v1165
        %v1167 = vmul.f32 %v1149, 1.442695
        %v1168 = vpow.pop %v1167
        %v1169 = vmul.f32 %v1150, 1.442695
        %v1170 = vpow.pop %v1169
        %v1171 = vmul.f32 %v1151, 1.442695
        %v1172 = vpow.pop %v1171
        %v1173 = vmul.f32 %v1152, 1.442695
        %v1174 = vpow.pop %v1173
        %v1175 = vmul.f32 %v1153, 1.442695
        %v1176 = vpow.pop %v1175
        %v1177 = vmul.f32 %v1154, 1.442695
        %v1178 = vpow.pop %v1177
        %v1179 = vmul.f32 %v1155, 1.442695
        %v1180 = vpow.pop %v1179
        %v1181 = vmul.f32 %v1156, 1.442695
        %v1182 = vpow.pop %v1181
        %v1183 = vmul.f32 %v1157, 1.442695
        %v1184 = vpow.pop %v1183
        %v1185 = vmul.f32 %v1158, 1.442695
        %v1186 = vpow.pop %v1185
        %v1187 = vmul.f32 %v1159, 1.442695
        %v1188 = vpow.pop %v1187
        %v1189 = vmul.f32 %v1160, 1.442695
        %v1190 = vpow.pop %v1189
        %v1191 = vmul.f32 %v1161, 1.442695
        %v1192 = vpow.pop %v1191
        %v1193 = vmul.f32 %v1162, 1.442695
        %v1194 = vpow.pop %v1193
        %v1195 = vadd.f32 %v1164, 1.0
        %v1196 = vadd.f32 %v1166, 1.0
        %v1197 = vadd.f32 %v1168, 1.0
        %v1198 = vadd.f32 %v1170, 1.0
        %v1199 = vadd.f32 %v1172, 1.0
        %v1200 = vadd.f32 %v1174, 1.0
        %v1201 = vadd.f32 %v1176, 1.0
        %v1202 = vadd.f32 %v1178, 1.0
        %v1203 = vadd.f32 %v1180, 1.0
        %v1204 = vadd.f32 %v1182, 1.0
        %v1205 = vadd.f32 %v1184, 1.0
        %v1206 = vadd.f32 %v1186, 1.0
        %v1207 = vadd.f32 %v1188, 1.0
        %v1208 = vadd.f32 %v1190, 1.0
        %v1209 = vadd.f32 %v1192, 1.0
        %v1210 = vadd.f32 %v1194, 1.0
        %v1211 = vrcp.pop %v1195
        %v1212 = vrcp.pop %v1196
        %v1213 = vrcp.pop %v1197
        %v1214 = vrcp.pop %v1198
        %v1215 = vrcp.pop %v1199
        %v1216 = vrcp.pop %v1200
        %v1217 = vrcp.pop %v1201
        %v1218 = vrcp.pop %v1202
        %v1219 = vrcp.pop %v1203
        %v1220 = vrcp.pop %v1204
        %v1221 = vrcp.pop %v1205
        %v1222 = vrcp.pop %v1206
        %v1223 = vrcp.pop %v1207
        %v1224 = vrcp.pop %v1208
        %v1225 = vrcp.pop %v1209
        %v1226 = vrcp.pop %v1210
        %v1227 = vmul.f32 %v1076, %v1211
        %v1228 = vmul.f32 %v1078, %v1212
        %v1229 = vmul.f32 %v1129, %v1213
        %v1230 = vmul.f32 %v1131, %v1214
        %v1231 = vmul.f32 %v1080, %v1215
        %v1232 = vmul.f32 %v1082, %v1216
        %v1233 = vmul.f32 %v1133, %v1217
        %v1234 = vmul.f32 %v1135, %v1218
        %v1235 = vmul.f32 %v1086, %v1219
        %v1236 = vmul.f32 %v1088, %v1220
        %v1237 = vmul.f32 %v1139, %v1221
        %v1238 = vmul.f32 %v1141, %v1222
        %v1239 = vmul.f32 %v1090, %v1223
        %v1240 = vmul.f32 %v1092, %v1224
        %v1241 = vmul.f32 %v1143, %v1225
        %v1242 = vmul.f32 %v1145, %v1226
        %v1243 = vpack.c.bf16 %v1231, %v1227
        %v1244 = vpack.c.bf16 %v1232, %v1228
        %v1245 = vpack.c.bf16 %v1233, %v1229
        %v1246 = vpack.c.bf16 %v1234, %v1230
        %v1247 = vpack.c.bf16 %v1239, %v1235
        %v1248 = vpack.c.bf16 %v1240, %v1236
        %v1249 = vpack.c.bf16 %v1241, %v1237
        %v1250 = vpack.c.bf16 %v1242, %v1238
        %1252 = vset.pattern.permute.xlu0 0
        %1253 = vperm.xlu0 %1252, %v383
        %v1254 = vpop.permute.xlu0 %1253
        %v1257 = vsel %vm541, %v369, 0
        %1259 = vmatprep.subr.bf16.mxu0 %v1244
        %1260 = vmatpush1.bf16.msra.mxu0 %v1243
        %1261 = vmatprep.subr.bf16.mxu0 %v1248
        %1262 = vmatpush1.bf16.msra.mxu0 %v1247
        %1263 = vmatprep.subr.bf16.mxu0 0
        %1264 = vmatpush1.bf16.msra.mxu0 0
        %1265 = vmatprep.subr.bf16.mxu0 0
        %1266 = vmatpush1.bf16.msra.mxu0 0
        %1267 = vmatprep.subr.bf16.mxu0 0
        %1268 = vmatpush1.bf16.msra.mxu0 0
        %1269 = vmatprep.subr.bf16.mxu0 0
        %1270 = vmatpush1.bf16.msra.mxu0 0
        %1271 = vmatprep.subr.bf16.mxu0 0
        %1272 = vmatpush1.bf16.msra.mxu0 0
        %1273 = vmatprep.subr.bf16.mxu0 0
        %1274 = vmatpush1.bf16.msra.mxu0 0
        %1275 = vmatprep.subr.bf16.mxu0 0
        %1276 = vmatpush1.bf16.msra.mxu0 0
        %1277 = vmatprep.subr.bf16.mxu0 0
        %1278 = vmatpush1.bf16.msra.mxu0 0
        %1279 = vmatprep.subr.bf16.mxu0 0
        %1280 = vmatpush1.bf16.msra.mxu0 0
        %1281 = vmatprep.subr.bf16.mxu0 0
        %1282 = vmatpush1.bf16.msra.mxu0 0
        %1283 = vmatprep.subr.bf16.mxu0 0
        %1284 = vmatpush1.bf16.msra.mxu0 0
        %1285 = vmatprep.subr.bf16.mxu0 0
        %1286 = vmatpush1.bf16.msra.mxu0 0
        %1287 = vmatprep.subr.bf16.mxu0 0
        %1288 = vmatpush1.bf16.msra.mxu0 0
        %1289 = vmatprep.subr.bf16.mxu0 0
        %1290 = vmatpush1.bf16.msra.mxu0 0
        %1291 = vmatprep.mubr.bf16.mxu0 0
        %1292 = vmatmul.mubr.bf16.gmra.mrb[0].mxu0 %v1257
        %v1293 = vpop.f32.mrb[0].mxu0
        %v1294 = vadd.f32 %v1254, %v1293
        %v1295 = vpop.f32.mrb[0].mxu0
        %v1296 = vadd.f32 %v1254, %v1295
        %v1297 = vpop.f32.mrb[0].mxu0
        %v1298 = vpop.f32.mrb[0].mxu0
        %1299 = vdwg.mxu0
        %1300 = vmatprep.subr.bf16.mxu0 %v1246
        %1301 = vmatpush1.bf16.msra.mxu0 %v1245
        %1302 = vmatprep.subr.bf16.mxu0 %v1250
        %1303 = vmatpush1.bf16.msra.mxu0 %v1249
        %1304 = vmatprep.subr.bf16.mxu0 0
        %1305 = vmatpush1.bf16.msra.mxu0 0
        %1306 = vmatprep.subr.bf16.mxu0 0
        %1307 = vmatpush1.bf16.msra.mxu0 0
        %1308 = vmatprep.subr.bf16.mxu0 0
        %1309 = vmatpush1.bf16.msra.mxu0 0
        %1310 = vmatprep.subr.bf16.mxu0 0
        %1311 = vmatpush1.bf16.msra.mxu0 0
        %1312 = vmatprep.subr.bf16.mxu0 0
        %1313 = vmatpush1.bf16.msra.mxu0 0
        %1314 = vmatprep.subr.bf16.mxu0 0
        %1315 = vmatpush1.bf16.msra.mxu0 0
        %1316 = vmatprep.subr.bf16.mxu0 0
        %1317 = vmatpush1.bf16.msra.mxu0 0
        %1318 = vmatprep.subr.bf16.mxu0 0
        %1319 = vmatpush1.bf16.msra.mxu0 0
        %1320 = vmatprep.subr.bf16.mxu0 0
        %1321 = vmatpush1.bf16.msra.mxu0 0
        %1322 = vmatprep.subr.bf16.mxu0 0
        %1323 = vmatpush1.bf16.msra.mxu0 0
        %1324 = vmatprep.subr.bf16.mxu0 0
        %1325 = vmatpush1.bf16.msra.mxu0 0
        %1326 = vmatprep.subr.bf16.mxu0 0
        %1327 = vmatpush1.bf16.msra.mxu0 0
        %1328 = vmatprep.subr.bf16.mxu0 0
        %1329 = vmatpush1.bf16.msra.mxu0 0
        %1330 = vmatprep.subr.bf16.mxu0 0
        %1331 = vmatpush1.bf16.msra.mxu0 0
        %1332 = vmatprep.mubr.bf16.mxu0 0
        %1333 = vmatmul.mubr.bf16.gmra.mrb[0].mxu0 %v1257
        %v1334 = vpop.f32.mrb[0].mxu0
        %v1335 = vadd.f32 %v1254, %v1334
        %v1336 = vpop.f32.mrb[0].mxu0
        %v1337 = vadd.f32 %v1254, %v1336
        %v1338 = vpop.f32.mrb[0].mxu0
        %v1339 = vpop.f32.mrb[0].mxu0
        %1340 = vdwg.mxu0
        %v1341 = vsub.f32 0.0, %v1294
        %v1342 = vsub.f32 0.0, %v1296
        %v1343 = vsub.f32 0.0, %v1335
        %v1344 = vsub.f32 0.0, %v1337
        %v1345 = vmul.f32 %v1341, 1.442695
        %v1346 = vpow.pop %v1345
        %v1347 = vmul.f32 %v1342, 1.442695
        %v1348 = vpow.pop %v1347
        %v1349 = vmul.f32 %v1343, 1.442695
        %v1350 = vpow.pop %v1349
        %v1351 = vmul.f32 %v1344, 1.442695
        %v1352 = vpow.pop %v1351
        %v1353 = vadd.f32 %v1346, 1.0
        %v1354 = vadd.f32 %v1348, 1.0
        %v1355 = vadd.f32 %v1350, 1.0
        %v1356 = vadd.f32 %v1352, 1.0
        %v1357 = vrcp.pop %v1353
        %v1358 = vrcp.pop %v1354
        %v1359 = vrcp.pop %v1355
        %v1360 = vrcp.pop %v1356
        %v1361 = vmul.f32 %v1294, %v1357
        %v1362 = vmul.f32 %v1296, %v1358
        %v1363 = vmul.f32 %v1335, %v1359
        %v1364 = vmul.f32 %v1337, %v1360
        %1366 = vset.pattern.permute.xlu0 0
        %1367 = vperm.xlu0 %1366, %v370
        %v1368 = vpop.permute.xlu0 %1367
        %v1370 = vmul.f32 %v1361, %v1368
        %v1371 = vmul.f32 %v1362, %v1368
        %v1372 = vmul.f32 %v1363, %v1368
        %v1373 = vmul.f32 %v1364, %v1368
        %v1374 = vrot.slane %v1370, 4
        %v1375 = vadd.f32 %v1370, %v1374
        %v1376 = vrot.slane %v1375, 2
        %v1377 = vadd.f32 %v1375, %v1376
        %v1378 = vrot.slane %v1377, 1
        %v1379 = vadd.f32 %v1377, %v1378
        %v1380 = vrot.slane %v1371, 4
        %v1381 = vadd.f32 %v1371, %v1380
        %v1382 = vrot.slane %v1381, 2
        %v1383 = vadd.f32 %v1381, %v1382
        %v1384 = vrot.slane %v1383, 1
        %v1385 = vadd.f32 %v1383, %v1384
        %v1386 = vrot.slane %v1372, 4
        %v1387 = vadd.f32 %v1372, %v1386
        %v1388 = vrot.slane %v1387, 2
        %v1389 = vadd.f32 %v1387, %v1388
        %v1390 = vrot.slane %v1389, 1
        %v1391 = vadd.f32 %v1389, %v1390
        %v1392 = vrot.slane %v1373, 4
        %v1393 = vadd.f32 %v1373, %v1392
        %v1394 = vrot.slane %v1393, 2
        %v1395 = vadd.f32 %v1393, %v1394
        %v1396 = vrot.slane %v1395, 1
        %v1397 = vadd.f32 %v1395, %v1396
        %1399 = vset.pattern.permute.xlu0 0
        %1400 = vperm.xlu0 %1399, %v384
        %v1401 = vpop.permute.xlu0 %1400
        %v1403 = vlaneseq
        %v1404 = vshrl.u32 %v1403, 7
        %v1405 = vsub.s32 0, %v1404
        %v1406 = vrot.slane %v1401, %v1405
        %v1407 = vadd.f32 %v1379, %v1406
        %v1408 = vadd.f32 %v1385, %v1406
        %v1409 = vadd.f32 %v1391, %v1406
        %v1410 = vadd.f32 %v1397, %v1406
        %v1411 = vsub.f32 0.0, %v1407
        %v1412 = vsub.f32 0.0, %v1408
        %v1413 = vsub.f32 0.0, %v1409
        %v1414 = vsub.f32 0.0, %v1410
        %v1415 = vmul.f32 %v1411, 1.442695
        %v1416 = vpow.pop %v1415
        %v1417 = vmul.f32 %v1412, 1.442695
        %v1418 = vpow.pop %v1417
        %v1419 = vmul.f32 %v1413, 1.442695
        %v1420 = vpow.pop %v1419
        %v1421 = vmul.f32 %v1414, 1.442695
        %v1422 = vpow.pop %v1421
        %v1423 = vadd.f32 %v1416, 1.0
        %v1424 = vadd.f32 %v1418, 1.0
        %v1425 = vadd.f32 %v1420, 1.0
        %v1426 = vadd.f32 %v1422, 1.0
        %v1427 = vrcp.pop %v1423
        %v1428 = vrcp.pop %v1424
        %v1429 = vrcp.pop %v1425
        %v1430 = vrcp.pop %v1426
        %v1431 = vmul.f32 %v1407, %v1427
        %v1432 = vmul.f32 %v1408, %v1428
        %v1433 = vmul.f32 %v1409, %v1429
        %v1434 = vmul.f32 %v1410, %v1430
        %v1439 = vcombine.low %v1431, %v1432
        %v1440 = vcombine.low %v1433, %v1434
        %v1442 = vunpack.c.l.s4 1966171168
        %v1443 = vunpack.c.0.s8 %v1442
        %v1444 = vlaneseq
        %v1445 = vshrl.u32 %v1444, 7
        %v1446 = vsub.s32 %v1443, %v1445
        %v1447 = vrot.slane %v1439, %v1446
        %v1449 = vunpack.c.l.s4 1966171168
        %v1450 = vunpack.c.0.s8 %v1449
        %v1451 = vlaneseq
        %v1452 = vshrl.u32 %v1451, 7
        %v1453 = vsub.s32 %v1450, %v1452
        %v1454 = vrot.slane %v1440, %v1453
        %v1455 = vcombine.low %v1447, %v1454
        %v1457 = vunpack.c.l.s4 1966171168
        %v1458 = vunpack.c.0.s8 %v1457
        %v1459 = vlaneseq
        %v1460 = vshrl.u32 %v1459, 7
        %v1461 = vsub.s32 %v1458, %v1460
        %v1462 = vrot.slane %v1455, %v1461
        %v1464 = vlaneseq
        %vm1465 = vcmp.ge.s32.totalorder %v1464, 0
        %vm1466 = vcmp.lt.s32.totalorder %v1464, 512
        %vm1467 = vmand %vm1465, %vm1466
        %1468 = vst.msk [vmem:[%s340] sm:$0xf] %vm1467, %v1462
        %v1469 = vld [vmem:[%s349 + $0x200] sm:$0xff]
        %v1470 = vld [vmem:[%s349 + $0x208] sm:$0xff]
        %v1471 = vld [vmem:[%s349 + $0x210] sm:$0xff]
        %v1472 = vld [vmem:[%s349 + $0x218] sm:$0xff]
        %v1473 = vld [vmem:[%s349 + $0x220] sm:$0xff]
        %v1474 = vld [vmem:[%s349 + $0x228] sm:$0xff]
        %v1475 = vld [vmem:[%s349 + $0x230] sm:$0xff]
        %v1476 = vld [vmem:[%s349 + $0x238] sm:$0xff]
        %v1477 = vld [vmem:[%s349 + $0x240] sm:$0xff]
        %v1478 = vld [vmem:[%s349 + $0x248] sm:$0xff]
        %v1479 = vld [vmem:[%s349 + $0x250] sm:$0xff]
        %v1480 = vld [vmem:[%s349 + $0x258] sm:$0xff]
        %v1481 = vld [vmem:[%s349 + $0x260] sm:$0xff]
        %v1482 = vld [vmem:[%s349 + $0x268] sm:$0xff]
        %v1483 = vld [vmem:[%s349 + $0x270] sm:$0xff]
        %v1484 = vld [vmem:[%s349 + $0x278] sm:$0xff]
        %v1485 = vld [vmem:[%s349 + $0x280] sm:$0xff]
        %v1486 = vld [vmem:[%s349 + $0x288] sm:$0xff]
        %v1487 = vld [vmem:[%s349 + $0x290] sm:$0xff]
        %v1488 = vld [vmem:[%s349 + $0x298] sm:$0xff]
        %v1489 = vld [vmem:[%s349 + $0x2a0] sm:$0xff]
        %v1490 = vld [vmem:[%s349 + $0x2a8] sm:$0xff]
        %v1491 = vld [vmem:[%s349 + $0x2b0] sm:$0xff]
        %v1492 = vld [vmem:[%s349 + $0x2b8] sm:$0xff]
        %v1493 = vld [vmem:[%s349 + $0x2c0] sm:$0xff]
        %v1494 = vld [vmem:[%s349 + $0x2c8] sm:$0xff]
        %v1495 = vld [vmem:[%s349 + $0x2d0] sm:$0xff]
        %v1496 = vld [vmem:[%s349 + $0x2d8] sm:$0xff]
        %v1497 = vld [vmem:[%s349 + $0x2e0] sm:$0xff]
        %v1498 = vld [vmem:[%s349 + $0x2e8] sm:$0xff]
        %v1499 = vld [vmem:[%s349 + $0x2f0] sm:$0xff]
        %v1500 = vld [vmem:[%s349 + $0x2f8] sm:$0xff]
        %v1501 = vld [vmem:[%s349 + $0x300] sm:$0xff]
        %v1502 = vld [vmem:[%s349 + $0x308] sm:$0xff]
        %v1503 = vld [vmem:[%s349 + $0x310] sm:$0xff]
        %v1504 = vld [vmem:[%s349 + $0x318] sm:$0xff]
        %v1505 = vld [vmem:[%s349 + $0x320] sm:$0xff]
        %v1506 = vld [vmem:[%s349 + $0x328] sm:$0xff]
        %v1507 = vld [vmem:[%s349 + $0x330] sm:$0xff]
        %v1508 = vld [vmem:[%s349 + $0x338] sm:$0xff]
        %v1509 = vld [vmem:[%s349 + $0x340] sm:$0xff]
        %v1510 = vld [vmem:[%s349 + $0x348] sm:$0xff]
        %v1511 = vld [vmem:[%s349 + $0x350] sm:$0xff]
        %v1512 = vld [vmem:[%s349 + $0x358] sm:$0xff]
        %v1513 = vld [vmem:[%s349 + $0x360] sm:$0xff]
        %v1514 = vld [vmem:[%s349 + $0x368] sm:$0xff]
        %v1515 = vld [vmem:[%s349 + $0x370] sm:$0xff]
        %v1516 = vld [vmem:[%s349 + $0x378] sm:$0xff]
        %v1517 = vld [vmem:[%s349 + $0x380] sm:$0xff]
        %v1518 = vld [vmem:[%s349 + $0x388] sm:$0xff]
        %v1519 = vld [vmem:[%s349 + $0x390] sm:$0xff]
        %v1520 = vld [vmem:[%s349 + $0x398] sm:$0xff]
        %v1521 = vld [vmem:[%s349 + $0x3a0] sm:$0xff]
        %v1522 = vld [vmem:[%s349 + $0x3a8] sm:$0xff]
        %v1523 = vld [vmem:[%s349 + $0x3b0] sm:$0xff]
        %v1524 = vld [vmem:[%s349 + $0x3b8] sm:$0xff]
        %v1525 = vld [vmem:[%s349 + $0x3c0] sm:$0xff]
        %v1526 = vld [vmem:[%s349 + $0x3c8] sm:$0xff]
        %v1527 = vld [vmem:[%s349 + $0x3d0] sm:$0xff]
        %v1528 = vld [vmem:[%s349 + $0x3d8] sm:$0xff]
        %v1529 = vld [vmem:[%s349 + $0x3e0] sm:$0xff]
        %v1530 = vld [vmem:[%s349 + $0x3e8] sm:$0xff]
        %v1531 = vld [vmem:[%s349 + $0x3f0] sm:$0xff]
        %v1532 = vld [vmem:[%s349 + $0x3f8] sm:$0xff]
        %v1533 = vpack.c.bf16 %v1470, %v1469
        %v1534 = vpack.c.bf16 %v1472, %v1471
        %v1535 = vpack.c.bf16 %v1474, %v1473
        %v1536 = vpack.c.bf16 %v1476, %v1475
        %v1537 = vpack.c.bf16 %v1478, %v1477
        %v1538 = vpack.c.bf16 %v1480, %v1479
        %v1539 = vpack.c.bf16 %v1482, %v1481
        %v1540 = vpack.c.bf16 %v1484, %v1483
        %v1541 = vpack.c.bf16 %v1486, %v1485
        %v1542 = vpack.c.bf16 %v1488, %v1487
        %v1543 = vpack.c.bf16 %v1490, %v1489
        %v1544 = vpack.c.bf16 %v1492, %v1491
        %v1545 = vpack.c.bf16 %v1494, %v1493
        %v1546 = vpack.c.bf16 %v1496, %v1495
        %v1547 = vpack.c.bf16 %v1498, %v1497
        %v1548 = vpack.c.bf16 %v1500, %v1499
        %v1549 = vpack.c.bf16 %v1502, %v1501
        %v1550 = vpack.c.bf16 %v1504, %v1503
        %v1551 = vpack.c.bf16 %v1506, %v1505
        %v1552 = vpack.c.bf16 %v1508, %v1507
        %v1553 = vpack.c.bf16 %v1510, %v1509
        %v1554 = vpack.c.bf16 %v1512, %v1511
        %v1555 = vpack.c.bf16 %v1514, %v1513
        %v1556 = vpack.c.bf16 %v1516, %v1515
        %v1557 = vpack.c.bf16 %v1518, %v1517
        %v1558 = vpack.c.bf16 %v1520, %v1519
        %v1559 = vpack.c.bf16 %v1522, %v1521
        %v1560 = vpack.c.bf16 %v1524, %v1523
        %v1561 = vpack.c.bf16 %v1526, %v1525
        %v1562 = vpack.c.bf16 %v1528, %v1527
        %v1563 = vpack.c.bf16 %v1530, %v1529
        %v1564 = vpack.c.bf16 %v1532, %v1531
        %v1566 = vsel %vm541, %v1533, 0
        %v1569 = vsel %vm541, %v1534, 0
        %v1572 = vsel %vm541, %v1535, 0
        %v1575 = vsel %vm541, %v1536, 0
        %v1578 = vsel %vm541, %v1537, 0
        %v1581 = vsel %vm541, %v1538, 0
        %v1584 = vsel %vm541, %v1539, 0
        %v1587 = vsel %vm541, %v1540, 0
        %v1590 = vsel %vm541, %v1541, 0
        %v1593 = vsel %vm541, %v1542, 0
        %v1596 = vsel %vm541, %v1543, 0
        %v1599 = vsel %vm541, %v1544, 0
        %v1602 = vsel %vm541, %v1545, 0
        %v1605 = vsel %vm541, %v1546, 0
        %v1608 = vsel %vm541, %v1547, 0
        %v1611 = vsel %vm541, %v1548, 0
        %v1614 = vsel %vm541, %v1549, 0
        %v1617 = vsel %vm541, %v1550, 0
        %v1620 = vsel %vm541, %v1551, 0
        %v1623 = vsel %vm541, %v1552, 0
        %v1626 = vsel %vm541, %v1553, 0
        %v1629 = vsel %vm541, %v1554, 0
        %v1632 = vsel %vm541, %v1555, 0
        %v1635 = vsel %vm541, %v1556, 0
        %v1638 = vsel %vm541, %v1557, 0
        %v1641 = vsel %vm541, %v1558, 0
        %v1644 = vsel %vm541, %v1559, 0
        %v1647 = vsel %vm541, %v1560, 0
        %v1650 = vsel %vm541, %v1561, 0
        %v1653 = vsel %vm541, %v1562, 0
        %v1656 = vsel %vm541, %v1563, 0
        %v1659 = vsel %vm541, %v1564, 0
        %1661 = vmatprep.subr.bf16.mxu0 0
        %1662 = vmatpush1.bf16.xpose.msra.mxu0 %v1566
        %1663 = vmatprep.subr.bf16.mxu0 0
        %1664 = vmatpush1.bf16.xpose.msra.mxu0 %v1569
        %1665 = vmatprep.subr.bf16.mxu0 0
        %1666 = vmatpush1.bf16.xpose.msra.mxu0 %v1572
        %1667 = vmatprep.subr.bf16.mxu0 0
        %1668 = vmatpush1.bf16.xpose.msra.mxu0 %v1575
        %1669 = vmatprep.subr.bf16.mxu0 0
        %1670 = vmatpush1.bf16.xpose.msra.mxu0 %v1578
        %1671 = vmatprep.subr.bf16.mxu0 0
        %1672 = vmatpush1.bf16.xpose.msra.mxu0 %v1581
        %1673 = vmatprep.subr.bf16.mxu0 0
        %1674 = vmatpush1.bf16.xpose.msra.mxu0 %v1584
        %1675 = vmatprep.subr.bf16.mxu0 0
        %1676 = vmatpush1.bf16.xpose.msra.mxu0 %v1587
        %1677 = vmatprep.subr.bf16.mxu0 0
        %1678 = vmatpush1.bf16.xpose.msra.mxu0 %v1590
        %1679 = vmatprep.subr.bf16.mxu0 0
        %1680 = vmatpush1.bf16.xpose.msra.mxu0 %v1593
        %1681 = vmatprep.subr.bf16.mxu0 0
        %1682 = vmatpush1.bf16.xpose.msra.mxu0 %v1596
        %1683 = vmatprep.subr.bf16.mxu0 0
        %1684 = vmatpush1.bf16.xpose.msra.mxu0 %v1599
        %1685 = vmatprep.subr.bf16.mxu0 0
        %1686 = vmatpush1.bf16.xpose.msra.mxu0 %v1602
        %1687 = vmatprep.subr.bf16.mxu0 0
        %1688 = vmatpush1.bf16.xpose.msra.mxu0 %v1605
        %1689 = vmatprep.subr.bf16.mxu0 0
        %1690 = vmatpush1.bf16.xpose.msra.mxu0 %v1608
        %1691 = vmatprep.subr.bf16.mxu0 0
        %1692 = vmatpush1.bf16.xpose.msra.mxu0 %v1611
        %1693 = vmatprep.mubr.bf16.mxu0 0
        %1694 = vmatmul.mubr.bf16.gmra.mrb[0].mxu0 %v543
        %v1695 = vpop.f32.mrb[0].mxu0
        %v1696 = vadd.f32 %v484, %v1695
        %v1697 = vpop.f32.mrb[0].mxu0
        %v1698 = vadd.f32 %v484, %v1697
        %v1699 = vpop.f32.mrb[0].mxu0
        %v1700 = vadd.f32 %v489, %v1699
        %v1701 = vpop.f32.mrb[0].mxu0
        %v1702 = vadd.f32 %v489, %v1701
        %1703 = vmatprep.mubr.bf16.mxu0 0
        %1704 = vmatmul.mubr.bf16.gmra.mrb[0].mxu0 %v546
        %v1705 = vpop.f32.mrb[0].mxu0
        %v1706 = vadd.f32 %v494, %v1705
        %v1707 = vpop.f32.mrb[0].mxu0
        %v1708 = vadd.f32 %v494, %v1707
        %v1709 = vpop.f32.mrb[0].mxu0
        %v1710 = vadd.f32 %v499, %v1709
        %v1711 = vpop.f32.mrb[0].mxu0
        %v1712 = vadd.f32 %v499, %v1711
        %1713 = vmatprep.mubr.bf16.mxu0 0
        %1714 = vmatmul.mubr.bf16.gmra.mrb[0].mxu0 %v549
        %v1715 = vpop.f32.mrb[0].mxu0
        %v1716 = vadd.f32 %v504, %v1715
        %v1717 = vpop.f32.mrb[0].mxu0
        %v1718 = vadd.f32 %v504, %v1717
        %v1719 = vpop.f32.mrb[0].mxu0
        %v1720 = vadd.f32 %v509, %v1719
        %v1721 = vpop.f32.mrb[0].mxu0
        %v1722 = vadd.f32 %v509, %v1721
        %1723 = vmatprep.mubr.bf16.mxu0 0
        %1724 = vmatmul.mubr.bf16.gmra.mrb[0].mxu0 %v552
        %v1725 = vpop.f32.mrb[0].mxu0
        %v1726 = vadd.f32 %v514, %v1725
        %v1727 = vpop.f32.mrb[0].mxu0
        %v1728 = vadd.f32 %v514, %v1727
        %v1729 = vpop.f32.mrb[0].mxu0
        %v1730 = vadd.f32 %v519, %v1729
        %v1731 = vpop.f32.mrb[0].mxu0
        %v1732 = vadd.f32 %v519, %v1731
        %1733 = vdwg.mxu0
        %1734 = vmatprep.subr.bf16.mxu0 0
        %1735 = vmatpush1.bf16.xpose.msra.mxu0 %v1614
        %1736 = vmatprep.subr.bf16.mxu0 0
        %1737 = vmatpush1.bf16.xpose.msra.mxu0 %v1617
        %1738 = vmatprep.subr.bf16.mxu0 0
        %1739 = vmatpush1.bf16.xpose.msra.mxu0 %v1620
        %1740 = vmatprep.subr.bf16.mxu0 0
        %1741 = vmatpush1.bf16.xpose.msra.mxu0 %v1623
        %1742 = vmatprep.subr.bf16.mxu0 0
        %1743 = vmatpush1.bf16.xpose.msra.mxu0 %v1626
        %1744 = vmatprep.subr.bf16.mxu0 0
        %1745 = vmatpush1.bf16.xpose.msra.mxu0 %v1629
        %1746 = vmatprep.subr.bf16.mxu0 0
        %1747 = vmatpush1.bf16.xpose.msra.mxu0 %v1632
        %1748 = vmatprep.subr.bf16.mxu0 0
        %1749 = vmatpush1.bf16.xpose.msra.mxu0 %v1635
        %1750 = vmatprep.subr.bf16.mxu0 0
        %1751 = vmatpush1.bf16.xpose.msra.mxu0 %v1638
        %1752 = vmatprep.subr.bf16.mxu0 0
        %1753 = vmatpush1.bf16.xpose.msra.mxu0 %v1641
        %1754 = vmatprep.subr.bf16.mxu0 0
        %1755 = vmatpush1.bf16.xpose.msra.mxu0 %v1644
        %1756 = vmatprep.subr.bf16.mxu0 0
        %1757 = vmatpush1.bf16.xpose.msra.mxu0 %v1647
        %1758 = vmatprep.subr.bf16.mxu0 0
        %1759 = vmatpush1.bf16.xpose.msra.mxu0 %v1650
        %1760 = vmatprep.subr.bf16.mxu0 0
        %1761 = vmatpush1.bf16.xpose.msra.mxu0 %v1653
        %1762 = vmatprep.subr.bf16.mxu0 0
        %1763 = vmatpush1.bf16.xpose.msra.mxu0 %v1656
        %1764 = vmatprep.subr.bf16.mxu0 0
        %1765 = vmatpush1.bf16.xpose.msra.mxu0 %v1659
        %1766 = vmatprep.mubr.bf16.mxu0 0
        %1767 = vmatmul.mubr.bf16.gmra.mrb[0].mxu0 %v543
        %v1768 = vpop.f32.mrb[0].mxu0
        %v1769 = vadd.f32 %v484, %v1768
        %v1770 = vpop.f32.mrb[0].mxu0
        %v1771 = vadd.f32 %v484, %v1770
        %v1772 = vpop.f32.mrb[0].mxu0
        %v1773 = vadd.f32 %v489, %v1772
        %v1774 = vpop.f32.mrb[0].mxu0
        %v1775 = vadd.f32 %v489, %v1774
        %1776 = vmatprep.mubr.bf16.mxu0 0
        %1777 = vmatmul.mubr.bf16.gmra.mrb[0].mxu0 %v546
        %v1778 = vpop.f32.mrb[0].mxu0
        %v1779 = vadd.f32 %v494, %v1778
        %v1780 = vpop.f32.mrb[0].mxu0
        %v1781 = vadd.f32 %v494, %v1780
        %v1782 = vpop.f32.mrb[0].mxu0
        %v1783 = vadd.f32 %v499, %v1782
        %v1784 = vpop.f32.mrb[0].mxu0
        %v1785 = vadd.f32 %v499, %v1784
        %1786 = vmatprep.mubr.bf16.mxu0 0
        %1787 = vmatmul.mubr.bf16.gmra.mrb[0].mxu0 %v549
        %v1788 = vpop.f32.mrb[0].mxu0
        %v1789 = vadd.f32 %v504, %v1788
        %v1790 = vpop.f32.mrb[0].mxu0
        %v1791 = vadd.f32 %v504, %v1790
        %v1792 = vpop.f32.mrb[0].mxu0
        %v1793 = vadd.f32 %v509, %v1792
        %v1794 = vpop.f32.mrb[0].mxu0
        %v1795 = vadd.f32 %v509, %v1794
        %1796 = vmatprep.mubr.bf16.mxu0 0
        %1797 = vmatmul.mubr.bf16.gmra.mrb[0].mxu0 %v552
        %v1798 = vpop.f32.mrb[0].mxu0
        %v1799 = vadd.f32 %v514, %v1798
        %v1800 = vpop.f32.mrb[0].mxu0
        %v1801 = vadd.f32 %v514, %v1800
        %v1802 = vpop.f32.mrb[0].mxu0
        %v1803 = vadd.f32 %v519, %v1802
        %v1804 = vpop.f32.mrb[0].mxu0
        %v1805 = vadd.f32 %v519, %v1804
        %1806 = vdwg.mxu0
        %v1807 = vsub.f32 0.0, %v1696
        %v1808 = vsub.f32 0.0, %v1698
        %v1809 = vsub.f32 0.0, %v1769
        %v1810 = vsub.f32 0.0, %v1771
        %v1811 = vsub.f32 0.0, %v1700
        %v1812 = vsub.f32 0.0, %v1702
        %v1813 = vsub.f32 0.0, %v1773
        %v1814 = vsub.f32 0.0, %v1775
        %v1815 = vsub.f32 0.0, %v1706
        %v1816 = vsub.f32 0.0, %v1708
        %v1817 = vsub.f32 0.0, %v1779
        %v1818 = vsub.f32 0.0, %v1781
        %v1819 = vsub.f32 0.0, %v1710
        %v1820 = vsub.f32 0.0, %v1712
        %v1821 = vsub.f32 0.0, %v1783
        %v1822 = vsub.f32 0.0, %v1785
        %v1823 = vsub.f32 0.0, %v1716
        %v1824 = vsub.f32 0.0, %v1718
        %v1825 = vsub.f32 0.0, %v1789
        %v1826 = vsub.f32 0.0, %v1791
        %v1827 = vsub.f32 0.0, %v1720
        %v1828 = vsub.f32 0.0, %v1722
        %v1829 = vsub.f32 0.0, %v1793
        %v1830 = vsub.f32 0.0, %v1795
        %v1831 = vsub.f32 0.0, %v1726
        %v1832 = vsub.f32 0.0, %v1728
        %v1833 = vsub.f32 0.0, %v1799
        %v1834 = vsub.f32 0.0, %v1801
        %v1835 = vsub.f32 0.0, %v1730
        %v1836 = vsub.f32 0.0, %v1732
        %v1837 = vsub.f32 0.0, %v1803
        %v1838 = vsub.f32 0.0, %v1805
        %v1839 = vmul.f32 %v1807, 1.442695
        %v1840 = vpow.pop %v1839
        %v1841 = vmul.f32 %v1808, 1.442695
        %v1842 = vpow.pop %v1841
        %v1843 = vmul.f32 %v1809, 1.442695
        %v1844 = vpow.pop %v1843
        %v1845 = vmul.f32 %v1810, 1.442695
        %v1846 = vpow.pop %v1845
        %v1847 = vmul.f32 %v1811, 1.442695
        %v1848 = vpow.pop %v1847
        %v1849 = vmul.f32 %v1812, 1.442695
        %v1850 = vpow.pop %v1849
        %v1851 = vmul.f32 %v1813, 1.442695
        %v1852 = vpow.pop %v1851
        %v1853 = vmul.f32 %v1814, 1.442695
        %v1854 = vpow.pop %v1853
        %v1855 = vmul.f32 %v1815, 1.442695
        %v1856 = vpow.pop %v1855
        %v1857 = vmul.f32 %v1816, 1.442695
        %v1858 = vpow.pop %v1857
        %v1859 = vmul.f32 %v1817, 1.442695
        %v1860 = vpow.pop %v1859
        %v1861 = vmul.f32 %v1818, 1.442695
        %v1862 = vpow.pop %v1861
        %v1863 = vmul.f32 %v1819, 1.442695
        %v1864 = vpow.pop %v1863
        %v1865 = vmul.f32 %v1820, 1.442695
        %v1866 = vpow.pop %v1865
        %v1867 = vmul.f32 %v1821, 1.442695
        %v1868 = vpow.pop %v1867
        %v1869 = vmul.f32 %v1822, 1.442695
        %v1870 = vpow.pop %v1869
        %v1871 = vmul.f32 %v1823, 1.442695
        %v1872 = vpow.pop %v1871
        %v1873 = vmul.f32 %v1824, 1.442695
        %v1874 = vpow.pop %v1873
        %v1875 = vmul.f32 %v1825, 1.442695
        %v1876 = vpow.pop %v1875
        %v1877 = vmul.f32 %v1826, 1.442695
        %v1878 = vpow.pop %v1877
        %v1879 = vmul.f32 %v1827, 1.442695
        %v1880 = vpow.pop %v1879
        %v1881 = vmul.f32 %v1828, 1.442695
        %v1882 = vpow.pop %v1881
        %v1883 = vmul.f32 %v1829, 1.442695
        %v1884 = vpow.pop %v1883
        %v1885 = vmul.f32 %v1830, 1.442695
        %v1886 = vpow.pop %v1885
        %v1887 = vmul.f32 %v1831, 1.442695
        %v1888 = vpow.pop %v1887
        %v1889 = vmul.f32 %v1832, 1.442695
        %v1890 = vpow.pop %v1889
        %v1891 = vmul.f32 %v1833, 1.442695
        %v1892 = vpow.pop %v1891
        %v1893 = vmul.f32 %v1834, 1.442695
        %v1894 = vpow.pop %v1893
        %v1895 = vmul.f32 %v1835, 1.442695
        %v1896 = vpow.pop %v1895
        %v1897 = vmul.f32 %v1836, 1.442695
        %v1898 = vpow.pop %v1897
        %v1899 = vmul.f32 %v1837, 1.442695
        %v1900 = vpow.pop %v1899
        %v1901 = vmul.f32 %v1838, 1.442695
        %v1902 = vpow.pop %v1901
        %v1903 = vadd.f32 %v1840, 1.0
        %v1904 = vadd.f32 %v1842, 1.0
        %v1905 = vadd.f32 %v1844, 1.0
        %v1906 = vadd.f32 %v1846, 1.0
        %v1907 = vadd.f32 %v1848, 1.0
        %v1908 = vadd.f32 %v1850, 1.0
        %v1909 = vadd.f32 %v1852, 1.0
        %v1910 = vadd.f32 %v1854, 1.0
        %v1911 = vadd.f32 %v1856, 1.0
        %v1912 = vadd.f32 %v1858, 1.0
        %v1913 = vadd.f32 %v1860, 1.0
        %v1914 = vadd.f32 %v1862, 1.0
        %v1915 = vadd.f32 %v1864, 1.0
        %v1916 = vadd.f32 %v1866, 1.0
        %v1917 = vadd.f32 %v1868, 1.0
        %v1918 = vadd.f32 %v1870, 1.0
        %v1919 = vadd.f32 %v1872, 1.0
        %v1920 = vadd.f32 %v1874, 1.0
        %v1921 = vadd.f32 %v1876, 1.0
        %v1922 = vadd.f32 %v1878, 1.0
        %v1923 = vadd.f32 %v1880, 1.0
        %v1924 = vadd.f32 %v1882, 1.0
        %v1925 = vadd.f32 %v1884, 1.0
        %v1926 = vadd.f32 %v1886, 1.0
        %v1927 = vadd.f32 %v1888, 1.0
        %v1928 = vadd.f32 %v1890, 1.0
        %v1929 = vadd.f32 %v1892, 1.0
        %v1930 = vadd.f32 %v1894, 1.0
        %v1931 = vadd.f32 %v1896, 1.0
        %v1932 = vadd.f32 %v1898, 1.0
        %v1933 = vadd.f32 %v1900, 1.0
        %v1934 = vadd.f32 %v1902, 1.0
        %v1935 = vrcp.pop %v1903
        %v1936 = vrcp.pop %v1904
        %v1937 = vrcp.pop %v1905
        %v1938 = vrcp.pop %v1906
        %v1939 = vrcp.pop %v1907
        %v1940 = vrcp.pop %v1908
        %v1941 = vrcp.pop %v1909
        %v1942 = vrcp.pop %v1910
        %v1943 = vrcp.pop %v1911
        %v1944 = vrcp.pop %v1912
        %v1945 = vrcp.pop %v1913
        %v1946 = vrcp.pop %v1914
        %v1947 = vrcp.pop %v1915
        %v1948 = vrcp.pop %v1916
        %v1949 = vrcp.pop %v1917
        %v1950 = vrcp.pop %v1918
        %v1951 = vrcp.pop %v1919
        %v1952 = vrcp.pop %v1920
        %v1953 = vrcp.pop %v1921
        %v1954 = vrcp.pop %v1922
        %v1955 = vrcp.pop %v1923
        %v1956 = vrcp.pop %v1924
        %v1957 = vrcp.pop %v1925
        %v1958 = vrcp.pop %v1926
        %v1959 = vrcp.pop %v1927
        %v1960 = vrcp.pop %v1928
        %v1961 = vrcp.pop %v1929
        %v1962 = vrcp.pop %v1930
        %v1963 = vrcp.pop %v1931
        %v1964 = vrcp.pop %v1932
        %v1965 = vrcp.pop %v1933
        %v1966 = vrcp.pop %v1934
        %v1967 = vmul.f32 %v1696, %v1935
        %v1968 = vmul.f32 %v1698, %v1936
        %v1969 = vmul.f32 %v1769, %v1937
        %v1970 = vmul.f32 %v1771, %v1938
        %v1971 = vmul.f32 %v1700, %v1939
        %v1972 = vmul.f32 %v1702, %v1940
        %v1973 = vmul.f32 %v1773, %v1941
        %v1974 = vmul.f32 %v1775, %v1942
        %v1975 = vmul.f32 %v1706, %v1943
        %v1976 = vmul.f32 %v1708, %v1944
        %v1977 = vmul.f32 %v1779, %v1945
        %v1978 = vmul.f32 %v1781, %v1946
        %v1979 = vmul.f32 %v1710, %v1947
        %v1980 = vmul.f32 %v1712, %v1948
        %v1981 = vmul.f32 %v1783, %v1949
        %v1982 = vmul.f32 %v1785, %v1950
        %v1983 = vmul.f32 %v1716, %v1951
        %v1984 = vmul.f32 %v1718, %v1952
        %v1985 = vmul.f32 %v1789, %v1953
        %v1986 = vmul.f32 %v1791, %v1954
        %v1987 = vmul.f32 %v1720, %v1955
        %v1988 = vmul.f32 %v1722, %v1956
        %v1989 = vmul.f32 %v1793, %v1957
        %v1990 = vmul.f32 %v1795, %v1958
        %v1991 = vmul.f32 %v1726, %v1959
        %v1992 = vmul.f32 %v1728, %v1960
        %v1993 = vmul.f32 %v1799, %v1961
        %v1994 = vmul.f32 %v1801, %v1962
        %v1995 = vmul.f32 %v1730, %v1963
        %v1996 = vmul.f32 %v1732, %v1964
        %v1997 = vmul.f32 %v1803, %v1965
        %v1998 = vmul.f32 %v1805, %v1966
        %v1999 = vpack.c.bf16 %v1971, %v1967
        %v2000 = vpack.c.bf16 %v1972, %v1968
        %v2001 = vpack.c.bf16 %v1973, %v1969
        %v2002 = vpack.c.bf16 %v1974, %v1970
        %v2003 = vpack.c.bf16 %v1979, %v1975
        %v2004 = vpack.c.bf16 %v1980, %v1976
        %v2005 = vpack.c.bf16 %v1981, %v1977
        %v2006 = vpack.c.bf16 %v1982, %v1978
        %v2007 = vpack.c.bf16 %v1987, %v1983
        %v2008 = vpack.c.bf16 %v1988, %v1984
        %v2009 = vpack.c.bf16 %v1989, %v1985
        %v2010 = vpack.c.bf16 %v1990, %v1986
        %v2011 = vpack.c.bf16 %v1995, %v1991
        %v2012 = vpack.c.bf16 %v1996, %v1992
        %v2013 = vpack.c.bf16 %v1997, %v1993
        %v2014 = vpack.c.bf16 %v1998, %v1994
        %2015 = vmatprep.subr.bf16.mxu0 %v2000
        %2016 = vmatpush1.bf16.msra.mxu0 %v1999
        %2017 = vmatprep.subr.bf16.mxu0 %v2004
        %2018 = vmatpush1.bf16.msra.mxu0 %v2003
        %2019 = vmatprep.subr.bf16.mxu0 %v2008
        %2020 = vmatpush1.bf16.msra.mxu0 %v2007
        %2021 = vmatprep.subr.bf16.mxu0 %v2012
        %2022 = vmatpush1.bf16.msra.mxu0 %v2011
        %2023 = vmatprep.subr.bf16.mxu0 0
        %2024 = vmatpush1.bf16.msra.mxu0 0
        %2025 = vmatprep.subr.bf16.mxu0 0
        %2026 = vmatpush1.bf16.msra.mxu0 0
        %2027 = vmatprep.subr.bf16.mxu0 0
        %2028 = vmatpush1.bf16.msra.mxu0 0
        %2029 = vmatprep.subr.bf16.mxu0 0
        %2030 = vmatpush1.bf16.msra.mxu0 0
        %2031 = vmatprep.subr.bf16.mxu0 0
        %2032 = vmatpush1.bf16.msra.mxu0 0
        %2033 = vmatprep.subr.bf16.mxu0 0
        %2034 = vmatpush1.bf16.msra.mxu0 0
        %2035 = vmatprep.subr.bf16.mxu0 0
        %2036 = vmatpush1.bf16.msra.mxu0 0
        %2037 = vmatprep.subr.bf16.mxu0 0
        %2038 = vmatpush1.bf16.msra.mxu0 0
        %2039 = vmatprep.subr.bf16.mxu0 0
        %2040 = vmatpush1.bf16.msra.mxu0 0
        %2041 = vmatprep.subr.bf16.mxu0 0
        %2042 = vmatpush1.bf16.msra.mxu0 0
        %2043 = vmatprep.subr.bf16.mxu0 0
        %2044 = vmatpush1.bf16.msra.mxu0 0
        %2045 = vmatprep.subr.bf16.mxu0 0
        %2046 = vmatpush1.bf16.msra.mxu0 0
        %2047 = vmatprep.mubr.bf16.mxu0 0
        %2048 = vmatmul.mubr.bf16.gmra.mrb[0].mxu0 %v1036
        %v2049 = vpop.f32.mrb[0].mxu0
        %v2050 = vadd.f32 %v1007, %v2049
        %v2051 = vpop.f32.mrb[0].mxu0
        %v2052 = vadd.f32 %v1007, %v2051
        %v2053 = vpop.f32.mrb[0].mxu0
        %v2054 = vadd.f32 %v1012, %v2053
        %v2055 = vpop.f32.mrb[0].mxu0
        %v2056 = vadd.f32 %v1012, %v2055
        %2057 = vmatprep.mubr.bf16.mxu0 0
        %2058 = vmatmul.mubr.bf16.gmra.mrb[0].mxu0 %v1039
        %v2059 = vpop.f32.mrb[0].mxu0
        %v2060 = vadd.f32 %v1017, %v2059
        %v2061 = vpop.f32.mrb[0].mxu0
        %v2062 = vadd.f32 %v1017, %v2061
        %v2063 = vpop.f32.mrb[0].mxu0
        %v2064 = vadd.f32 %v1022, %v2063
        %v2065 = vpop.f32.mrb[0].mxu0
        %v2066 = vadd.f32 %v1022, %v2065
        %2067 = vdwg.mxu0
        %2068 = vmatprep.subr.bf16.mxu0 %v2002
        %2069 = vmatpush1.bf16.msra.mxu0 %v2001
        %2070 = vmatprep.subr.bf16.mxu0 %v2006
        %2071 = vmatpush1.bf16.msra.mxu0 %v2005
        %2072 = vmatprep.subr.bf16.mxu0 %v2010
        %2073 = vmatpush1.bf16.msra.mxu0 %v2009
        %2074 = vmatprep.subr.bf16.mxu0 %v2014
        %2075 = vmatpush1.bf16.msra.mxu0 %v2013
        %2076 = vmatprep.subr.bf16.mxu0 0
        %2077 = vmatpush1.bf16.msra.mxu0 0
        %2078 = vmatprep.subr.bf16.mxu0 0
        %2079 = vmatpush1.bf16.msra.mxu0 0
        %2080 = vmatprep.subr.bf16.mxu0 0
        %2081 = vmatpush1.bf16.msra.mxu0 0
        %2082 = vmatprep.subr.bf16.mxu0 0
        %2083 = vmatpush1.bf16.msra.mxu0 0
        %2084 = vmatprep.subr.bf16.mxu0 0
        %2085 = vmatpush1.bf16.msra.mxu0 0
        %2086 = vmatprep.subr.bf16.mxu0 0
        %2087 = vmatpush1.bf16.msra.mxu0 0
        %2088 = vmatprep.subr.bf16.mxu0 0
        %2089 = vmatpush1.bf16.msra.mxu0 0
        %2090 = vmatprep.subr.bf16.mxu0 0
        %2091 = vmatpush1.bf16.msra.mxu0 0
        %2092 = vmatprep.subr.bf16.mxu0 0
        %2093 = vmatpush1.bf16.msra.mxu0 0
        %2094 = vmatprep.subr.bf16.mxu0 0
        %2095 = vmatpush1.bf16.msra.mxu0 0
        %2096 = vmatprep.subr.bf16.mxu0 0
        %2097 = vmatpush1.bf16.msra.mxu0 0
        %2098 = vmatprep.subr.bf16.mxu0 0
        %2099 = vmatpush1.bf16.msra.mxu0 0
        %2100 = vmatprep.mubr.bf16.mxu0 0
        %2101 = vmatmul.mubr.bf16.gmra.mrb[0].mxu0 %v1036
        %v2102 = vpop.f32.mrb[0].mxu0
        %v2103 = vadd.f32 %v1007, %v2102
        %v2104 = vpop.f32.mrb[0].mxu0
        %v2105 = vadd.f32 %v1007, %v2104
        %v2106 = vpop.f32.mrb[0].mxu0
        %v2107 = vadd.f32 %v1012, %v2106
        %v2108 = vpop.f32.mrb[0].mxu0
        %v2109 = vadd.f32 %v1012, %v2108
        %2110 = vmatprep.mubr.bf16.mxu0 0
        %2111 = vmatmul.mubr.bf16.gmra.mrb[0].mxu0 %v1039
        %v2112 = vpop.f32.mrb[0].mxu0
        %v2113 = vadd.f32 %v1017, %v2112
        %v2114 = vpop.f32.mrb[0].mxu0
        %v2115 = vadd.f32 %v1017, %v2114
        %v2116 = vpop.f32.mrb[0].mxu0
        %v2117 = vadd.f32 %v1022, %v2116
        %v2118 = vpop.f32.mrb[0].mxu0
        %v2119 = vadd.f32 %v1022, %v2118
        %2120 = vdwg.mxu0
        %v2121 = vsub.f32 0.0, %v2050
        %v2122 = vsub.f32 0.0, %v2052
        %v2123 = vsub.f32 0.0, %v2103
        %v2124 = vsub.f32 0.0, %v2105
        %v2125 = vsub.f32 0.0, %v2054
        %v2126 = vsub.f32 0.0, %v2056
        %v2127 = vsub.f32 0.0, %v2107
        %v2128 = vsub.f32 0.0, %v2109
        %v2129 = vsub.f32 0.0, %v2060
        %v2130 = vsub.f32 0.0, %v2062
        %v2131 = vsub.f32 0.0, %v2113
        %v2132 = vsub.f32 0.0, %v2115
        %v2133 = vsub.f32 0.0, %v2064
        %v2134 = vsub.f32 0.0, %v2066
        %v2135 = vsub.f32 0.0, %v2117
        %v2136 = vsub.f32 0.0, %v2119
        %v2137 = vmul.f32 %v2121, 1.442695
        %v2138 = vpow.pop %v2137
        %v2139 = vmul.f32 %v2122, 1.442695
        %v2140 = vpow.pop %v2139
        %v2141 = vmul.f32 %v2123, 1.442695
        %v2142 = vpow.pop %v2141
        %v2143 = vmul.f32 %v2124, 1.442695
        %v2144 = vpow.pop %v2143
        %v2145 = vmul.f32 %v2125, 1.442695
        %v2146 = vpow.pop %v2145
        %v2147 = vmul.f32 %v2126, 1.442695
        %v2148 = vpow.pop %v2147
        %v2149 = vmul.f32 %v2127, 1.442695
        %v2150 = vpow.pop %v2149
        %v2151 = vmul.f32 %v2128, 1.442695
        %v2152 = vpow.pop %v2151
        %v2153 = vmul.f32 %v2129, 1.442695
        %v2154 = vpow.pop %v2153
        %v2155 = vmul.f32 %v2130, 1.442695
        %v2156 = vpow.pop %v2155
        %v2157 = vmul.f32 %v2131, 1.442695
        %v2158 = vpow.pop %v2157
        %v2159 = vmul.f32 %v2132, 1.442695
        %v2160 = vpow.pop %v2159
        %v2161 = vmul.f32 %v2133, 1.442695
        %v2162 = vpow.pop %v2161
        %v2163 = vmul.f32 %v2134, 1.442695
        %v2164 = vpow.pop %v2163
        %v2165 = vmul.f32 %v2135, 1.442695
        %v2166 = vpow.pop %v2165
        %v2167 = vmul.f32 %v2136, 1.442695
        %v2168 = vpow.pop %v2167
        %v2169 = vadd.f32 %v2138, 1.0
        %v2170 = vadd.f32 %v2140, 1.0
        %v2171 = vadd.f32 %v2142, 1.0
        %v2172 = vadd.f32 %v2144, 1.0
        %v2173 = vadd.f32 %v2146, 1.0
        %v2174 = vadd.f32 %v2148, 1.0
        %v2175 = vadd.f32 %v2150, 1.0
        %v2176 = vadd.f32 %v2152, 1.0
        %v2177 = vadd.f32 %v2154, 1.0
        %v2178 = vadd.f32 %v2156, 1.0
        %v2179 = vadd.f32 %v2158, 1.0
        %v2180 = vadd.f32 %v2160, 1.0
        %v2181 = vadd.f32 %v2162, 1.0
        %v2182 = vadd.f32 %v2164, 1.0
        %v2183 = vadd.f32 %v2166, 1.0
        %v2184 = vadd.f32 %v2168, 1.0
        %v2185 = vrcp.pop %v2169
        %v2186 = vrcp.pop %v2170
        %v2187 = vrcp.pop %v2171
        %v2188 = vrcp.pop %v2172
        %v2189 = vrcp.pop %v2173
        %v2190 = vrcp.pop %v2174
        %v2191 = vrcp.pop %v2175
        %v2192 = vrcp.pop %v2176
        %v2193 = vrcp.pop %v2177
        %v2194 = vrcp.pop %v2178
        %v2195 = vrcp.pop %v2179
        %v2196 = vrcp.pop %v2180
        %v2197 = vrcp.pop %v2181
        %v2198 = vrcp.pop %v2182
        %v2199 = vrcp.pop %v2183
        %v2200 = vrcp.pop %v2184
        %v2201 = vmul.f32 %v2050, %v2185
        %v2202 = vmul.f32 %v2052, %v2186
        %v2203 = vmul.f32 %v2103, %v2187
        %v2204 = vmul.f32 %v2105, %v2188
        %v2205 = vmul.f32 %v2054, %v2189
        %v2206 = vmul.f32 %v2056, %v2190
        %v2207 = vmul.f32 %v2107, %v2191
        %v2208 = vmul.f32 %v2109, %v2192
        %v2209 = vmul.f32 %v2060, %v2193
        %v2210 = vmul.f32 %v2062, %v2194
        %v2211 = vmul.f32 %v2113, %v2195
        %v2212 = vmul.f32 %v2115, %v2196
        %v2213 = vmul.f32 %v2064, %v2197
        %v2214 = vmul.f32 %v2066, %v2198
        %v2215 = vmul.f32 %v2117, %v2199
        %v2216 = vmul.f32 %v2119, %v2200
        %v2217 = vpack.c.bf16 %v2205, %v2201
        %v2218 = vpack.c.bf16 %v2206, %v2202
        %v2219 = vpack.c.bf16 %v2207, %v2203
        %v2220 = vpack.c.bf16 %v2208, %v2204
        %v2221 = vpack.c.bf16 %v2213, %v2209
        %v2222 = vpack.c.bf16 %v2214, %v2210
        %v2223 = vpack.c.bf16 %v2215, %v2211
        %v2224 = vpack.c.bf16 %v2216, %v2212
        %2225 = vmatprep.subr.bf16.mxu0 %v2218
        %2226 = vmatpush1.bf16.msra.mxu0 %v2217
        %2227 = vmatprep.subr.bf16.mxu0 %v2222
        %2228 = vmatpush1.bf16.msra.mxu0 %v2221
        %2229 = vmatprep.subr.bf16.mxu0 0
        %2230 = vmatpush1.bf16.msra.mxu0 0
        %2231 = vmatprep.subr.bf16.mxu0 0
        %2232 = vmatpush1.bf16.msra.mxu0 0
        %2233 = vmatprep.subr.bf16.mxu0 0
        %2234 = vmatpush1.bf16.msra.mxu0 0
        %2235 = vmatprep.subr.bf16.mxu0 0
        %2236 = vmatpush1.bf16.msra.mxu0 0
        %2237 = vmatprep.subr.bf16.mxu0 0
        %2238 = vmatpush1.bf16.msra.mxu0 0
        %2239 = vmatprep.subr.bf16.mxu0 0
        %2240 = vmatpush1.bf16.msra.mxu0 0
        %2241 = vmatprep.subr.bf16.mxu0 0
        %2242 = vmatpush1.bf16.msra.mxu0 0
        %2243 = vmatprep.subr.bf16.mxu0 0
        %2244 = vmatpush1.bf16.msra.mxu0 0
        %2245 = vmatprep.subr.bf16.mxu0 0
        %2246 = vmatpush1.bf16.msra.mxu0 0
        %2247 = vmatprep.subr.bf16.mxu0 0
        %2248 = vmatpush1.bf16.msra.mxu0 0
        %2249 = vmatprep.subr.bf16.mxu0 0
        %2250 = vmatpush1.bf16.msra.mxu0 0
        %2251 = vmatprep.subr.bf16.mxu0 0
        %2252 = vmatpush1.bf16.msra.mxu0 0
        %2253 = vmatprep.subr.bf16.mxu0 0
        %2254 = vmatpush1.bf16.msra.mxu0 0
        %2255 = vmatprep.subr.bf16.mxu0 0
        %2256 = vmatpush1.bf16.msra.mxu0 0
        %2257 = vmatprep.mubr.bf16.mxu0 0
        %2258 = vmatmul.mubr.bf16.gmra.mrb[0].mxu0 %v1257
        %v2259 = vpop.f32.mrb[0].mxu0
        %v2260 = vadd.f32 %v1254, %v2259
        %v2261 = vpop.f32.mrb[0].mxu0
        %v2262 = vadd.f32 %v1254, %v2261
        %v2263 = vpop.f32.mrb[0].mxu0
        %v2264 = vpop.f32.mrb[0].mxu0
        %2265 = vdwg.mxu0
        %2266 = vmatprep.subr.bf16.mxu0 %v2220
        %2267 = vmatpush1.bf16.msra.mxu0 %v2219
        %2268 = vmatprep.subr.bf16.mxu0 %v2224
        %2269 = vmatpush1.bf16.msra.mxu0 %v2223
        %2270 = vmatprep.subr.bf16.mxu0 0
        %2271 = vmatpush1.bf16.msra.mxu0 0
        %2272 = vmatprep.subr.bf16.mxu0 0
        %2273 = vmatpush1.bf16.msra.mxu0 0
        %2274 = vmatprep.subr.bf16.mxu0 0
        %2275 = vmatpush1.bf16.msra.mxu0 0
        %2276 = vmatprep.subr.bf16.mxu0 0
        %2277 = vmatpush1.bf16.msra.mxu0 0
        %2278 = vmatprep.subr.bf16.mxu0 0
        %2279 = vmatpush1.bf16.msra.mxu0 0
        %2280 = vmatprep.subr.bf16.mxu0 0
        %2281 = vmatpush1.bf16.msra.mxu0 0
        %2282 = vmatprep.subr.bf16.mxu0 0
        %2283 = vmatpush1.bf16.msra.mxu0 0
        %2284 = vmatprep.subr.bf16.mxu0 0
        %2285 = vmatpush1.bf16.msra.mxu0 0
        %2286 = vmatprep.subr.bf16.mxu0 0
        %2287 = vmatpush1.bf16.msra.mxu0 0
        %2288 = vmatprep.subr.bf16.mxu0 0
        %2289 = vmatpush1.bf16.msra.mxu0 0
        %2290 = vmatprep.subr.bf16.mxu0 0
        %2291 = vmatpush1.bf16.msra.mxu0 0
        %2292 = vmatprep.subr.bf16.mxu0 0
        %2293 = vmatpush1.bf16.msra.mxu0 0
        %2294 = vmatprep.subr.bf16.mxu0 0
        %2295 = vmatpush1.bf16.msra.mxu0 0
        %2296 = vmatprep.subr.bf16.mxu0 0
        %2297 = vmatpush1.bf16.msra.mxu0 0
        %2298 = vmatprep.mubr.bf16.mxu0 0
        %2299 = vmatmul.mubr.bf16.gmra.mrb[0].mxu0 %v1257
        %v2300 = vpop.f32.mrb[0].mxu0
        %v2301 = vadd.f32 %v1254, %v2300
        %v2302 = vpop.f32.mrb[0].mxu0
        %v2303 = vadd.f32 %v1254, %v2302
        %v2304 = vpop.f32.mrb[0].mxu0
        %v2305 = vpop.f32.mrb[0].mxu0
        %2306 = vdwg.mxu0
        %v2307 = vsub.f32 0.0, %v2260
        %v2308 = vsub.f32 0.0, %v2262
        %v2309 = vsub.f32 0.0, %v2301
        %v2310 = vsub.f32 0.0, %v2303
        %v2311 = vmul.f32 %v2307, 1.442695
        %v2312 = vpow.pop %v2311
        %v2313 = vmul.f32 %v2308, 1.442695
        %v2314 = vpow.pop %v2313
        %v2315 = vmul.f32 %v2309, 1.442695
        %v2316 = vpow.pop %v2315
        %v2317 = vmul.f32 %v2310, 1.442695
        %v2318 = vpow.pop %v2317
        %v2319 = vadd.f32 %v2312, 1.0
        %v2320 = vadd.f32 %v2314, 1.0
        %v2321 = vadd.f32 %v2316, 1.0
        %v2322 = vadd.f32 %v2318, 1.0
        %v2323 = vrcp.pop %v2319
        %v2324 = vrcp.pop %v2320
        %v2325 = vrcp.pop %v2321
        %v2326 = vrcp.pop %v2322
        %v2327 = vmul.f32 %v2260, %v2323
        %v2328 = vmul.f32 %v2262, %v2324
        %v2329 = vmul.f32 %v2301, %v2325
        %v2330 = vmul.f32 %v2303, %v2326
        %v2331 = vmul.f32 %v2327, %v1368
        %v2332 = vmul.f32 %v2328, %v1368
        %v2333 = vmul.f32 %v2329, %v1368
        %v2334 = vmul.f32 %v2330, %v1368
        %v2335 = vrot.slane %v2331, 4
        %v2336 = vadd.f32 %v2331, %v2335
        %v2337 = vrot.slane %v2336, 2
        %v2338 = vadd.f32 %v2336, %v2337
        %v2339 = vrot.slane %v2338, 1
        %v2340 = vadd.f32 %v2338, %v2339
        %v2341 = vrot.slane %v2332, 4
        %v2342 = vadd.f32 %v2332, %v2341
        %v2343 = vrot.slane %v2342, 2
        %v2344 = vadd.f32 %v2342, %v2343
        %v2345 = vrot.slane %v2344, 1
        %v2346 = vadd.f32 %v2344, %v2345
        %v2347 = vrot.slane %v2333, 4
        %v2348 = vadd.f32 %v2333, %v2347
        %v2349 = vrot.slane %v2348, 2
        %v2350 = vadd.f32 %v2348, %v2349
        %v2351 = vrot.slane %v2350, 1
        %v2352 = vadd.f32 %v2350, %v2351
        %v2353 = vrot.slane %v2334, 4
        %v2354 = vadd.f32 %v2334, %v2353
        %v2355 = vrot.slane %v2354, 2
        %v2356 = vadd.f32 %v2354, %v2355
        %v2357 = vrot.slane %v2356, 1
        %v2358 = vadd.f32 %v2356, %v2357
        %v2359 = vadd.f32 %v2340, %v1406
        %v2360 = vadd.f32 %v2346, %v1406
        %v2361 = vadd.f32 %v2352, %v1406
        %v2362 = vadd.f32 %v2358, %v1406
        %v2363 = vsub.f32 0.0, %v2359
        %v2364 = vsub.f32 0.0, %v2360
        %v2365 = vsub.f32 0.0, %v2361
        %v2366 = vsub.f32 0.0, %v2362
        %v2367 = vmul.f32 %v2363, 1.442695
        %v2368 = vpow.pop %v2367
        %v2369 = vmul.f32 %v2364, 1.442695
        %v2370 = vpow.pop %v2369
        %v2371 = vmul.f32 %v2365, 1.442695
        %v2372 = vpow.pop %v2371
        %v2373 = vmul.f32 %v2366, 1.442695
        %v2374 = vpow.pop %v2373
        %v2375 = vadd.f32 %v2368, 1.0
        %v2376 = vadd.f32 %v2370, 1.0
        %v2377 = vadd.f32 %v2372, 1.0
        %v2378 = vadd.f32 %v2374, 1.0
        %v2379 = vrcp.pop %v2375
        %v2380 = vrcp.pop %v2376
        %v2381 = vrcp.pop %v2377
        %v2382 = vrcp.pop %v2378
        %v2383 = vmul.f32 %v2359, %v2379
        %v2384 = vmul.f32 %v2360, %v2380
        %v2385 = vmul.f32 %v2361, %v2381
        %v2386 = vmul.f32 %v2362, %v2382
        %v2391 = vcombine.low %v2383, %v2384
        %v2392 = vcombine.low %v2385, %v2386
        %v2394 = vunpack.c.l.s4 1966171168
        %v2395 = vunpack.c.0.s8 %v2394
        %v2396 = vlaneseq
        %v2397 = vshrl.u32 %v2396, 7
        %v2398 = vsub.s32 %v2395, %v2397
        %v2399 = vrot.slane %v2391, %v2398
        %v2401 = vunpack.c.l.s4 1966171168
        %v2402 = vunpack.c.0.s8 %v2401
        %v2403 = vlaneseq
        %v2404 = vshrl.u32 %v2403, 7
        %v2405 = vsub.s32 %v2402, %v2404
        %v2406 = vrot.slane %v2392, %v2405
        %v2407 = vcombine.low %v2399, %v2406
        %v2409 = vunpack.c.l.s4 1966171168
        %v2410 = vunpack.c.0.s8 %v2409
        %v2411 = vlaneseq
        %v2412 = vshrl.u32 %v2411, 7
        %v2413 = vsub.s32 %v2410, %v2412
        %v2414 = vrot.slane %v2407, %v2413
        %2416 = vst.msk [vmem:[%s340 + $0x4] sm:$0xf] %vm1467, %v2414
        %s2417 = sand.u32 %s227, 1
        %s2418 = scalar_lea.sflag [#allocation4], %s2417
        %s2419 = sand.u32 %s227, 1
        %s2420 = smul.addr %s2419, 8
        %s2421 = scalar_lea.vmem [#allocation3], %s2420
        // Predicated region
        $region57: #{tpu_custom_call.1} parent=55 // pred_check
          %p2422 = pneg %p237
        $region58: #{tpu_custom_call.1} parent=55 // pred_check_branch
          %2424 = sbr.rel (%p2422) target = $region60
        $region59: #{tpu_custom_call.1} parent=55 // pred_region
          %s2425 = smul.u32 8, %s25
          %s2427 = ssub.s32 128, 128
          %2428 = vsyncadd %s2418, %s2427
          %s2429 = smul.addr %s2425, 16
          %s2430 = scalar_lea.hbm %s9, %s2429
          %s2432 = sshll.u32 %s2421, 4
          %s2433 = int_to_ptr.vmem [resolvable:$true] %s2432
          %2435 = dma.vmem_to_hbm [thread:$0]  %s2433, 128, %s2430, %s2418
        $region60: #{tpu_custom_call.1} parent=55 // pred_fallthru
          _
      $region56: #{tpu_custom_call.1} parent=5 // pred_fallthru
        _
      %p2436 = scmp.le.s32.totalorder 2, %s20
      // Predicated region
      $region61: #{tpu_custom_call.1} parent=5 // pred_check
        %p2437 = pneg %p2436
      $region62: #{tpu_custom_call.1} parent=5 // pred_check_branch
        %2439 = sbr.rel (%p2437) target = $region64
      $region63: #{tpu_custom_call.1} parent=5 // pred_region
        %s2440 = ssub.s32 %s20, 2
        // Predicated region
        $region65: #{tpu_custom_call.1} parent=63 // pred_check
          %p2441 = pneg %p243
        $region66: #{tpu_custom_call.1} parent=63 // pred_check_branch
          %2443 = sbr.rel (%p2441) target = $region68
        $region67: #{tpu_custom_call.1} parent=63 // pred_region
          %s2444 = sand.u32 %s228, 1
          %s2445 = scalar_lea.sflag [#allocation4], %s2444
          %s2446 = sand.u32 %s228, 1
          %s2447 = smul.addr %s2446, 8
          %s2448 = scalar_lea.vmem [#allocation3], %s2447
          %2449 = dma.done %s2445, 128
        $region68: #{tpu_custom_call.1} parent=63 // pred_fallthru
          _
      $region64: #{tpu_custom_call.1} parent=5 // pred_fallthru
        _
    $region6: #{tpu_custom_call.1} parent=1 // loop_footer
      %s24 = sadd.s32 1, %s20
    $region7: #{tpu_custom_call.1} parent=1 // loop_footer_branch
      %19 = sbr.rel target = $region3
    $region8: #{tpu_custom_call.1} parent=1 // loop_exit
      _
    %2450 = vsyncpa [#allocation4], 1
    %s2451 = scalar_lea.sflag [#allocation4], 1
    %2452 = vsyncpa %s2451, 1

</llo_original>
